<compile_context>
chip_gen: v7x
topology: tpu7x:2x2x1
jax: 0.10.0
libtpu: 0.0.40
codegen_flags: <defaults>
</compile_context>

<pallas_src>
import functools
import math

import jax
import jax.numpy as jnp
from jax import lax
from jax.experimental import pallas as pl
from jax.experimental.pallas import tpu as pltpu


# ---------------------------------------------------------------------------
# Kernel
# ---------------------------------------------------------------------------
def _attention_kernel(q_ref, k_ref, wq_ref, bq_ref, wk_ref, bk_ref, *rest,
                      scale, proj_values, approx_reciprocal):
    """One grid step: full attention forward for Bt batch elements."""
    if proj_values:
        wv_ref, bv_ref, out_ref = rest
    else:
        out_ref = rest[0]

    q = q_ref[...]                            # (Bt, Lq, Din)  f32 or bf16
    k = k_ref[...]                            # (Bt, Lk, Din)
    Bt, Lq, Din = q.shape
    Lk = k.shape[1]
    H = wq_ref.shape[1]
    mm_dtype = q.dtype                        # MXU input dtype (set by wrapper)

    b_q = bq_ref[...].astype(jnp.float32)     # (1, H) — biases always f32
    b_k = bk_ref[...].astype(jnp.float32)

    # Fold the batch dim into the matmul M dimension: one MXU-friendly
    # (Bt*L, Din) @ (Din, H) matmul per projection instead of Bt tiny ones.
    # (Lq / Lk multiples of 8 keep these reshapes pure sublane-concat no-ops.)
    q2 = q.reshape(Bt * Lq, Din)
    k2 = k.reshape(Bt * Lk, Din)

    # 1/sqrt(d_k) folded into proj_q (Lq*H mults) instead of scaling scores.
    proj_q = (jnp.dot(q2, wq_ref[...], preferred_element_type=jnp.float32)
              + b_q) * scale
    proj_k = jnp.dot(k2, wk_ref[...], preferred_element_type=jnp.float32) + b_k
    proj_q = proj_q.reshape(Bt, Lq, H).astype(mm_dtype)
    proj_k = proj_k.reshape(Bt, Lk, H).astype(mm_dtype)

    # Batched Q @ K^T without materializing a transpose of proj_k:
    # contract the trailing H dims with batch dim 0.
    scores = lax.dot_general(
        proj_q, proj_k,
        dimension_numbers=(((2,), (2,)), ((0,), (0,))),
        preferred_element_type=jnp.float32)            # (Bt, Lq, Lk), f32

    # Numerically stable softmax, always f32 (matches F.softmax; v5e-safe).
    m = jnp.max(scores, axis=-1, keepdims=True)
    e = jnp.exp(scores - m)
    denom = jnp.sum(e, axis=-1, keepdims=True)
    if approx_reciprocal:
        alphas = e * pl.reciprocal(denom, approx=True)   # EUP vrcp, opt-in only
    else:
        alphas = e / denom

    if proj_values:
        b_v = bv_ref[...].astype(jnp.float32)
        values = (jnp.dot(k2, wv_ref[...], preferred_element_type=jnp.float32)
                  + b_v)
        values = values.reshape(Bt, Lk, H).astype(mm_dtype)   # (Bt, Lk, H)
    else:
        values = k                                            # (Bt, Lk, Din)

    context = lax.dot_general(
        alphas.astype(values.dtype), values,
        dimension_numbers=(((2,), (1,)), ((0,), (0,))),
        preferred_element_type=jnp.float32)            # (Bt, Lq, Dv), f32

    # out_ref is either (Bt, Lq, Dv) or the lane-dense (Bt, 1, Lq*Dv) slab;
    # same element count, so a single reshape handles both.
    out_ref[...] = context.reshape(out_ref.shape).astype(out_ref.dtype)


# ---------------------------------------------------------------------------
# Hardware-aware sizing
# ---------------------------------------------------------------------------
def _tpu_hw_info():
    """(vmem_capacity_bytes, tensorcores_per_chip) with conservative fallbacks."""
    vmem_cap = 64 * 1024 * 1024        # v7x per-TC VMEM: safe lower bound
    num_cores = 1
    try:
        info = pltpu.get_tpu_info()
        vmem_cap = int(getattr(info, "vmem_capacity_bytes", vmem_cap))
    except Exception:
        pass
    try:
        kind = jax.devices()[0].device_kind.lower()
        if "v7" in kind or "7x" in kind:
            num_cores = 2              # v7x: 2 TensorCores per chip
    except Exception:
        pass
    return vmem_cap, num_cores


def _pick_block_b(B, Lq, Lk, Din, H, Dv, *, proj_values, in_itemsize,
                  w_itemsize, out_itemsize, n_weights, vmem_budget, num_cores):
    """Largest Bt whose full per-step footprint (tiles + softmax scratch) fits."""
    f32 = 4
    per_b = 2 * (Lq + Lk) * Din * in_itemsize      # q/k tiles, double-buffered
    per_b += 2 * Lq * Dv * out_itemsize            # out tile, double-buffered
    per_b += (Lq + Lk) * H * f32                   # proj_q, proj_k scratch
    per_b += 3 * Lq * Lk * f32                     # scores, exp, alphas scratch
    per_b += Lq * Dv * f32                         # context accumulator
    if proj_values:
        per_b += Lk * H * f32                      # projected values scratch
    fixed = n_weights * (Din * H * w_itemsize + H * f32)   # weights + biases

    avail = max(vmem_budget - fixed, per_b)
    bt = max(1, min(B, avail // per_b))
    if num_cores >= 2 and B >= 2:
        # Guarantee grid >= 2 so megacore sharding gives both TCs work and the
        # first tile's DMA is not fully exposed.
        bt = min(bt, (B + 1) // 2)
    return int(bt)


# ---------------------------------------------------------------------------
# Wrapper
# ---------------------------------------------------------------------------
def attention_forward(query, keys, params, *, proj_values=False,
                      mxu_dtype=jnp.bfloat16, approx_reciprocal=False,
                      block_b=None):
    """query: (B, Lq, Din), keys: (B, Lk, Din). Returns context (B, Lq, Dv).

    mxu_dtype=jnp.bfloat16 (default): bf16 MXU inputs / halved HBM DMAs with
    f32 accumulation and f32 softmax.  mxu_dtype=None: exact f32 semantics.
    """
    B, Lq, Din = query.shape
    _, Lk, _ = keys.shape
    wq, bq, wk, bk, wv, bv = params
    H = wq.shape[1]
    Dv = H if proj_values else Din
    out_dtype = query.dtype

    if mxu_dtype is not None and jnp.dtype(mxu_dtype) != jnp.dtype(query.dtype):
        # Wrapper-side cast: genuine bandwidth win (half the per-step DMA
        # bytes), accumulation stays f32 in-kernel.  NOTE: with
        # proj_values=False this also casts the (un-projected) values.
        query = query.astype(mxu_dtype)
        keys = keys.astype(mxu_dtype)
        wq = wq.astype(mxu_dtype)
        wk = wk.astype(mxu_dtype)
        if proj_values:
            wv = wv.astype(mxu_dtype)

    in_itemsize = jnp.dtype(query.dtype).itemsize
    w_itemsize = jnp.dtype(wq.dtype).itemsize
    out_itemsize = jnp.dtype(out_dtype).itemsize
    n_weights = 3 if proj_values else 2

    vmem_cap, num_cores = _tpu_hw_info()
    # ~96 MiB on 128 MiB chips (v5e/v6e), ~48 MiB on 64 MiB chips (v7x).
    vmem_limit = min(int(vmem_cap * 3 // 4), 110 * 1024 * 1024)
    tile_budget = int(vmem_limit * 3 // 4)

    if block_b is None:
        Bt = _pick_block_b(B, Lq, Lk, Din, H, Dv, proj_values=proj_values,
                           in_itemsize=in_itemsize, w_itemsize=w_itemsize,
                           out_itemsize=out_itemsize, n_weights=n_weights,
                           vmem_budget=tile_budget, num_cores=num_cores)
    else:
        Bt = int(block_b)
    Bt = max(1, min(Bt, B))

    grid = pl.cdiv(B, Bt)
    Bp = grid * Bt
    if Bp != B:
        pad = Bp - B
        query = jnp.pad(query, ((0, pad), (0, 0), (0, 0)))
        keys = jnp.pad(keys, ((0, pad), (0, 0), (0, 0)))

    # Lane-dense output: if Dv < a full 128-lane vreg, ship the output as a
    # (Bp, 1, Lq*Dv) slab so writeback uses unmasked full-lane stores.
    flat_out = (Dv % 128 != 0) and ((Lq * Dv) % 128 == 0)

    scale = 1.0 / math.sqrt(float(H))
    kernel = functools.partial(_attention_kernel, scale=scale,
                               proj_values=proj_values,
                               approx_reciprocal=approx_reciprocal)

    operands = [query, keys, wq, bq.reshape(1, H), wk, bk.reshape(1, H)]
    if proj_values:
        operands += [wv, bv.reshape(1, H)]          # only shipped when used

    flops = 2 * B * (Lq * Din * H + Lk * Din * H + Lq * Lk * H + Lq * Lk * Dv)
    if proj_values:
        flops += 2 * B * Lk * Din * H
    bytes_accessed = (B * (Lq + Lk) * Din * in_itemsize
                      + B * Lq * Dv * out_itemsize
                      + n_weights * (Din * H * w_itemsize + H * 4))
    cost = pl.CostEstimate(flops=int(flops), transcendentals=int(B * Lq * Lk),
                           bytes_accessed=int(bytes_accessed))

    if flat_out:
        out_shape = jax.ShapeDtypeStruct((Bp, 1, Lq * Dv), out_dtype)
        out_spec = pl.BlockSpec((Bt, 1, Lq * Dv), lambda b: (b, 0, 0))
    else:
        out_shape = jax.ShapeDtypeStruct((Bp, Lq, Dv), out_dtype)
        out_spec = pl.BlockSpec((Bt, Lq, Dv), lambda b: (b, 0, 0))

    def build(single_buffer_weights):
        def const_spec(shape):
            imap = lambda b: (0,) * len(shape)
            if single_buffer_weights:
                # Grid-invariant weights: keep one VMEM copy, not two.
                return pl.BlockSpec(shape, imap, pipeline_mode=pl.Buffered(1))
            return pl.BlockSpec(shape, imap)

        in_specs = [
            pl.BlockSpec((Bt, Lq, Din), lambda b: (b, 0, 0)),   # query tile
            pl.BlockSpec((Bt, Lk, Din), lambda b: (b, 0, 0)),   # keys tile
            const_spec((Din, H)), const_spec((1, H)),           # Wq^T, bq
            const_spec((Din, H)), const_spec((1, H)),           # Wk^T, bk
        ]
        if proj_values:
            in_specs += [const_spec((Din, H)), const_spec((1, H))]  # Wv^T, bv

        return pl.pallas_call(
            kernel,
            out_shape=out_shape,
            grid_spec=pltpu.PrefetchScalarGridSpec(
                num_scalar_prefetch=0,
                grid=(grid,),
                in_specs=in_specs,
                out_specs=out_spec,
            ),
            compiler_params=pltpu.CompilerParams(
                dimension_semantics=("parallel",),      # batch axis -> megacore
                vmem_limit_bytes=vmem_limit,
            ),
            cost_estimate=cost,
        )

    try:
        out = build(True)(*operands)
    except Exception:
        # Fallback if this Pallas version rejects single-buffered BlockSpecs.
        out = build(False)(*operands)

    if flat_out:
        out = out.reshape(Bp, Lq, Dv)
    if Bp != B:
        out = out[:B]
    return out


# ---------------------------------------------------------------------------
# Params / reference
# ---------------------------------------------------------------------------
def init_params(key, input_dim, hidden_dim):
    """Deterministic nn.Linear-style init. Weights returned as (in, out)."""
    ks = jax.random.split(key, 6)
    bound = 1.0 / math.sqrt(input_dim)

    def lin(kw, kb):
        w = jax.random.uniform(kw, (input_dim, hidden_dim), jnp.float32,
                               -bound, bound)
        b = jax.random.uniform(kb, (hidden_dim,), jnp.float32, -bound, bound)
        return w, b

    wq, bq = lin(ks[0], ks[1])
    wk, bk = lin(ks[2], ks[3])
    wv, bv = lin(ks[4], ks[5])
    return (wq, bq, wk, bk, wv, bv)


def reference_forward(query, keys, params, *, proj_values=False):
    """Pure-JAX reference mirroring the PyTorch module exactly."""
    wq, bq, wk, bk, wv, bv = params
    H = wq.shape[1]
    proj_q = query @ wq + bq
    proj_k = keys @ wk + bk
    values = (keys @ wv + bv) if proj_values else keys
    scores = jnp.einsum('bqh,bkh->bqk', proj_q, proj_k) / jnp.sqrt(
        jnp.asarray(H, jnp.float32))
    alphas = jax.nn.softmax(scores, axis=-1)
    return jnp.einsum('bqk,bkd->bqd', alphas, values)


if __name__ == "__main__":
    B, Lq, Lk, Din, H = 2, 8, 8, 32, 32  # input_dim == hidden_dim (module default)

    key = jax.random.PRNGKey(0)
    k_params, k_query, k_keys = jax.random.split(key, 3)

    params = init_params(k_params, Din, H)
    query = jax.random.normal(k_query, (B, Lq, Din), jnp.float32)
    keys = jax.random.normal(k_keys, (B, Lk, Din), jnp.float32)

    # Exact f32 path, default module config (proj_values=False, values = keys).
    out_f32 = attention_forward(query, keys, params, proj_values=False,
                                mxu_dtype=None)
    out_f32 = jax.block_until_ready(out_f32)
    ref = reference_forward(query, keys, params, proj_values=False)
    assert out_f32.shape == (B, Lq, Din)
    assert jnp.allclose(out_f32, ref, atol=1e-5, rtol=1e-5), \
        "f32 mismatch (proj_values=False)"

    # Default fast path: bf16 MXU inputs / DMAs, f32 accumulation + softmax.
    out_bf16 = attention_forward(query, keys, params, proj_values=False)
    out_bf16 = jax.block_until_ready(out_bf16)
    assert out_bf16.shape == (B, Lq, Din)
    assert jnp.allclose(out_bf16, ref, atol=5e-2, rtol=5e-2), \
        "bf16 mismatch (proj_values=False)"

    # proj_values=True path (Wv/bv shipped only here), exact f32.
    out_pv = attention_forward(query, keys, params, proj_values=True,
                               mxu_dtype=None)
    out_pv = jax.block_until_ready(out_pv)
    ref_pv = reference_forward(query, keys, params, proj_values=True)
    assert out_pv.shape == (B, Lq, H)
    assert jnp.allclose(out_pv, ref_pv, atol=1e-5, rtol=1e-5), \
        "f32 mismatch (proj_values=True)"

    print("KERNEL_OK")
</pallas_src>

<mosaic_0001>
module attributes {stable_mosaic.version = 11 : i64} {
  func.func @_attention_kernel(%arg0: i32, %arg1: memref<2x8x32xf32, #tpu.memory_space<vmem>>, %arg2: memref<2x8x32xf32, #tpu.memory_space<vmem>>, %arg3: memref<32x32xf32, #tpu.memory_space<vmem>>, %arg4: memref<1x32xf32, #tpu.memory_space<vmem>>, %arg5: memref<32x32xf32, #tpu.memory_space<vmem>>, %arg6: memref<1x32xf32, #tpu.memory_space<vmem>>, %arg7: memref<2x1x256xf32, #tpu.memory_space<vmem>>) attributes {dimension_semantics = [#tpu.dimension_semantics<parallel>], iteration_bounds = array<i64: 1>, scalar_prefetch = 0 : i64, scratch_operands = 0 : i64, tpu.core_type = #tpu.core_type<tc>, window_params = [{transform_indices = @transform_0, window_bounds = array<i64: 2, 8, 32>}, {transform_indices = @transform_1, window_bounds = array<i64: 2, 8, 32>}, {pipeline_mode = #tpu.pipeline_mode<synchronous>, transform_indices = @transform_2, window_bounds = array<i64: 32, 32>}, {pipeline_mode = #tpu.pipeline_mode<synchronous>, transform_indices = @transform_3, window_bounds = array<i64: 1, 32>}, {pipeline_mode = #tpu.pipeline_mode<synchronous>, transform_indices = @transform_4, window_bounds = array<i64: 32, 32>}, {pipeline_mode = #tpu.pipeline_mode<synchronous>, transform_indices = @transform_5, window_bounds = array<i64: 1, 32>}, {transform_indices = @transform_6, window_bounds = array<i64: 2, 1, 256>}]} {
    %c0 = arith.constant 0 : index
    %c0_0 = arith.constant 0 : index
    %c0_1 = arith.constant 0 : index
    %0 = vector.load %arg1[%c0, %c0_0, %c0_1] : memref<2x8x32xf32, #tpu.memory_space<vmem>>, vector<2x8x32xf32>
    %c0_2 = arith.constant 0 : index
    %c0_3 = arith.constant 0 : index
    %c0_4 = arith.constant 0 : index
    %1 = vector.load %arg2[%c0_2, %c0_3, %c0_4] : memref<2x8x32xf32, #tpu.memory_space<vmem>>, vector<2x8x32xf32>
    %c0_5 = arith.constant 0 : index
    %c0_6 = arith.constant 0 : index
    %2 = vector.load %arg4[%c0_5, %c0_6] : memref<1x32xf32, #tpu.memory_space<vmem>>, vector<1x32xf32>
    %c0_7 = arith.constant 0 : index
    %c0_8 = arith.constant 0 : index
    %3 = vector.load %arg6[%c0_7, %c0_8] : memref<1x32xf32, #tpu.memory_space<vmem>>, vector<1x32xf32>
    %4 = vector.shape_cast %0 : vector<2x8x32xf32> to vector<16x32xf32>
    %5 = vector.shape_cast %1 : vector<2x8x32xf32> to vector<16x32xf32>
    %c0_9 = arith.constant 0 : index
    %c0_10 = arith.constant 0 : index
    %6 = vector.load %arg3[%c0_9, %c0_10] : memref<32x32xf32, #tpu.memory_space<vmem>>, vector<32x32xf32>
    %cst = arith.constant dense<0.000000e+00> : vector<16x32xf32>
    %7 = tpu.matmul %4, %6, %cst {dimension_numbers = #tpu.dot_dimension_numbers<[1], [0], [0], [1], [0, 0, 1, 1], [], []>} : vector<16x32xf32>, vector<32x32xf32>, vector<16x32xf32> -> vector<16x32xf32>
    %8 = vector.broadcast %2 : vector<1x32xf32> to vector<16x32xf32>
    %9 = arith.addf %7, %8 : vector<16x32xf32>
    %cst_11 = arith.constant 0.176776692 : f32
    %10 = vector.broadcast %cst_11 : f32 to vector<16x32xf32>
    %11 = arith.mulf %9, %10 : vector<16x32xf32>
    %c0_12 = arith.constant 0 : index
    %c0_13 = arith.constant 0 : index
    %12 = vector.load %arg5[%c0_12, %c0_13] : memref<32x32xf32, #tpu.memory_space<vmem>>, vector<32x32xf32>
    %cst_14 = arith.constant dense<0.000000e+00> : vector<16x32xf32>
    %13 = tpu.matmul %5, %12, %cst_14 {dimension_numbers = #tpu.dot_dimension_numbers<[1], [0], [0], [1], [0, 0, 1, 1], [], []>} : vector<16x32xf32>, vector<32x32xf32>, vector<16x32xf32> -> vector<16x32xf32>
    %14 = vector.broadcast %3 : vector<1x32xf32> to vector<16x32xf32>
    %15 = arith.addf %13, %14 : vector<16x32xf32>
    %16 = vector.shape_cast %11 : vector<16x32xf32> to vector<2x8x32xf32>
    %17 = vector.shape_cast %15 : vector<16x32xf32> to vector<2x8x32xf32>
    %cst_15 = arith.constant dense<0.000000e+00> : vector<2x8x8xf32>
    %18 = tpu.matmul %16, %17, %cst_15 {dimension_numbers = #tpu.dot_dimension_numbers<[2], [2], [1], [1], [0, 0, 0, 1, 1, 1], [0], [0]>} : vector<2x8x32xf32>, vector<2x8x32xf32>, vector<2x8x8xf32> -> vector<2x8x8xf32>
    %cst_16 = arith.constant dense<0xFF800000> : vector<2x8xf32>
    %19 = vector.multi_reduction <maximumf>, %18, %cst_16 [2] : vector<2x8x8xf32> to vector<2x8xf32>
    %20 = vector.shape_cast %19 : vector<2x8xf32> to vector<2x8x1xf32>
    %21 = vector.broadcast %20 : vector<2x8x1xf32> to vector<2x8x8xf32>
    %22 = arith.subf %18, %21 : vector<2x8x8xf32>
    %23 = math.exp %22 : vector<2x8x8xf32>
    %cst_17 = arith.constant dense<0.000000e+00> : vector<2x8xf32>
    %24 = vector.multi_reduction <add>, %23, %cst_17 [2] : vector<2x8x8xf32> to vector<2x8xf32>
    %25 = vector.shape_cast %24 : vector<2x8xf32> to vector<2x8x1xf32>
    %26 = vector.broadcast %25 : vector<2x8x1xf32> to vector<2x8x8xf32>
    %27 = arith.divf %23, %26 : vector<2x8x8xf32>
    %cst_18 = arith.constant dense<0.000000e+00> : vector<2x8x32xf32>
    %28 = tpu.matmul %27, %1, %cst_18 {dimension_numbers = #tpu.dot_dimension_numbers<[2], [1], [1], [2], [0, 0, 0, 1, 1, 2], [0], [0]>} : vector<2x8x8xf32>, vector<2x8x32xf32>, vector<2x8x32xf32> -> vector<2x8x32xf32>
    %29 = vector.shape_cast %28 : vector<2x8x32xf32> to vector<2x1x256xf32>
    %c0_19 = arith.constant 0 : index
    %c0_20 = arith.constant 0 : index
    %c0_21 = arith.constant 0 : index
    %30 = vector.load %arg7[%c0_19, %c0_20, %c0_21] : memref<2x1x256xf32, #tpu.memory_space<vmem>>, vector<2x1x256xf32>
    tpu.vector_store %arg7[%c0_19, %c0_20, %c0_21], %29 {strides = array<i32>} : memref<2x1x256xf32, #tpu.memory_space<vmem>>, vector<2x1x256xf32>,
    return
  }
  func.func @transform_0(%arg0: i32) -> (i32, i32, i32) {
    %c0_i32 = arith.constant 0 : i32
    %c0_i32_0 = arith.constant 0 : i32
    %c0_i32_1 = arith.constant 0 : i32
    return %arg0, %c0_i32, %c0_i32_0 : i32, i32, i32
  }
  func.func @transform_1(%arg0: i32) -> (i32, i32, i32) {
    %c0_i32 = arith.constant 0 : i32
    %c0_i32_0 = arith.constant 0 : i32
    %c0_i32_1 = arith.constant 0 : i32
    return %arg0, %c0_i32, %c0_i32_0 : i32, i32, i32
  }
  func.func @transform_2(%arg0: i32) -> (i32, i32) {
    %c0_i32 = arith.constant 0 : i32
    %c0_i32_0 = arith.constant 0 : i32
    %c0_i32_1 = arith.constant 0 : i32
    return %c0_i32, %c0_i32_0 : i32, i32
  }
  func.func @transform_3(%arg0: i32) -> (i32, i32) {
    %c0_i32 = arith.constant 0 : i32
    %c0_i32_0 = arith.constant 0 : i32
    %c0_i32_1 = arith.constant 0 : i32
    return %c0_i32, %c0_i32_0 : i32, i32
  }
  func.func @transform_4(%arg0: i32) -> (i32, i32) {
    %c0_i32 = arith.constant 0 : i32
    %c0_i32_0 = arith.constant 0 : i32
    %c0_i32_1 = arith.constant 0 : i32
    return %c0_i32, %c0_i32_0 : i32, i32
  }
  func.func @transform_5(%arg0: i32) -> (i32, i32) {
    %c0_i32 = arith.constant 0 : i32
    %c0_i32_0 = arith.constant 0 : i32
    %c0_i32_1 = arith.constant 0 : i32
    return %c0_i32, %c0_i32_0 : i32, i32
  }
  func.func @transform_6(%arg0: i32) -> (i32, i32, i32) {
    %c0_i32 = arith.constant 0 : i32
    %c0_i32_0 = arith.constant 0 : i32
    %c0_i32_1 = arith.constant 0 : i32
    return %arg0, %c0_i32, %c0_i32_0 : i32, i32, i32
  }
}

module attributes {stable_mosaic.version = 11 : i64} {
  func.func @_attention_kernel(%arg0: i32, %arg1: memref<2x8x32xf32, #tpu.memory_space<vmem>>, %arg2: memref<2x8x32xf32, #tpu.memory_space<vmem>>, %arg3: memref<32x32xf32, #tpu.memory_space<vmem>>, %arg4: memref<1x32xf32, #tpu.memory_space<vmem>>, %arg5: memref<32x32xf32, #tpu.memory_space<vmem>>, %arg6: memref<1x32xf32, #tpu.memory_space<vmem>>, %arg7: memref<2x1x256xf32, #tpu.memory_space<vmem>>) attributes {dimension_semantics = [#tpu.dimension_semantics<parallel>], iteration_bounds = array<i64: 1>, scalar_prefetch = 0 : i64, scratch_operands = 0 : i64, tpu.core_type = #tpu.core_type<tc>, window_params = [{transform_indices = @transform_0, window_bounds = array<i64: 2, 8, 32>}, {transform_indices = @transform_1, window_bounds = array<i64: 2, 8, 32>}, {pipeline_mode = #tpu.pipeline_mode<synchronous>, transform_indices = @transform_2, window_bounds = array<i64: 32, 32>}, {pipeline_mode = #tpu.pipeline_mode<synchronous>, transform_indices = @transform_3, window_bounds = array<i64: 1, 32>}, {pipeline_mode = #tpu.pipeline_mode<synchronous>, transform_indices = @transform_4, window_bounds = array<i64: 32, 32>}, {pipeline_mode = #tpu.pipeline_mode<synchronous>, transform_indices = @transform_5, window_bounds = array<i64: 1, 32>}, {transform_indices = @transform_6, window_bounds = array<i64: 2, 1, 256>}]} {
    %c0 = arith.constant 0 : index
    %c0_0 = arith.constant 0 : index
    %c0_1 = arith.constant 0 : index
    %0 = vector.load %arg1[%c0, %c0_0, %c0_1] : memref<2x8x32xf32, #tpu.memory_space<vmem>>, vector<2x8x32xf32>
    %c0_2 = arith.constant 0 : index
    %c0_3 = arith.constant 0 : index
    %c0_4 = arith.constant 0 : index
    %1 = vector.load %arg2[%c0_2, %c0_3, %c0_4] : memref<2x8x32xf32, #tpu.memory_space<vmem>>, vector<2x8x32xf32>
    %c0_5 = arith.constant 0 : index
    %c0_6 = arith.constant 0 : index
    %2 = vector.load %arg4[%c0_5, %c0_6] : memref<1x32xf32, #tpu.memory_space<vmem>>, vector<1x32xf32>
    %c0_7 = arith.constant 0 : index
    %c0_8 = arith.constant 0 : index
    %3 = vector.load %arg6[%c0_7, %c0_8] : memref<1x32xf32, #tpu.memory_space<vmem>>, vector<1x32xf32>
    %4 = vector.shape_cast %0 : vector<2x8x32xf32> to vector<16x32xf32>
    %5 = vector.shape_cast %1 : vector<2x8x32xf32> to vector<16x32xf32>
    %c0_9 = arith.constant 0 : index
    %c0_10 = arith.constant 0 : index
    %6 = vector.load %arg3[%c0_9, %c0_10] : memref<32x32xf32, #tpu.memory_space<vmem>>, vector<32x32xf32>
    %cst = arith.constant dense<0.000000e+00> : vector<16x32xf32>
    %7 = tpu.matmul %4, %6, %cst {dimension_numbers = #tpu.dot_dimension_numbers<[1], [0], [0], [1], [0, 0, 1, 1], [], []>} : vector<16x32xf32>, vector<32x32xf32>, vector<16x32xf32> -> vector<16x32xf32>
    %8 = vector.broadcast %2 : vector<1x32xf32> to vector<16x32xf32>
    %9 = arith.addf %7, %8 : vector<16x32xf32>
    %cst_11 = arith.constant 0.176776692 : f32
    %10 = vector.broadcast %cst_11 : f32 to vector<16x32xf32>
    %11 = arith.mulf %9, %10 : vector<16x32xf32>
    %c0_12 = arith.constant 0 : index
    %c0_13 = arith.constant 0 : index
    %12 = vector.load %arg5[%c0_12, %c0_13] : memref<32x32xf32, #tpu.memory_space<vmem>>, vector<32x32xf32>
    %cst_14 = arith.constant dense<0.000000e+00> : vector<16x32xf32>
    %13 = tpu.matmul %5, %12, %cst_14 {dimension_numbers = #tpu.dot_dimension_numbers<[1], [0], [0], [1], [0, 0, 1, 1], [], []>} : vector<16x32xf32>, vector<32x32xf32>, vector<16x32xf32> -> vector<16x32xf32>
    %14 = vector.broadcast %3 : vector<1x32xf32> to vector<16x32xf32>
    %15 = arith.addf %13, %14 : vector<16x32xf32>
    %16 = vector.shape_cast %11 : vector<16x32xf32> to vector<2x8x32xf32>
    %17 = vector.shape_cast %15 : vector<16x32xf32> to vector<2x8x32xf32>
    %cst_15 = arith.constant dense<0.000000e+00> : vector<2x8x8xf32>
    %18 = tpu.matmul %16, %17, %cst_15 {dimension_numbers = #tpu.dot_dimension_numbers<[2], [2], [1], [1], [0, 0, 0, 1, 1, 1], [0], [0]>} : vector<2x8x32xf32>, vector<2x8x32xf32>, vector<2x8x8xf32> -> vector<2x8x8xf32>
    %cst_16 = arith.constant dense<0xFF800000> : vector<2x8xf32>
    %19 = vector.multi_reduction <maximumf>, %18, %cst_16 [2] : vector<2x8x8xf32> to vector<2x8xf32>
    %20 = vector.shape_cast %19 : vector<2x8xf32> to vector<2x8x1xf32>
    %21 = vector.broadcast %20 : vector<2x8x1xf32> to vector<2x8x8xf32>
    %22 = arith.subf %18, %21 : vector<2x8x8xf32>
    %23 = math.exp %22 : vector<2x8x8xf32>
    %cst_17 = arith.constant dense<0.000000e+00> : vector<2x8xf32>
    %24 = vector.multi_reduction <add>, %23, %cst_17 [2] : vector<2x8x8xf32> to vector<2x8xf32>
    %25 = vector.shape_cast %24 : vector<2x8xf32> to vector<2x8x1xf32>
    %26 = vector.broadcast %25 : vector<2x8x1xf32> to vector<2x8x8xf32>
    %27 = arith.divf %23, %26 : vector<2x8x8xf32>
    %cst_18 = arith.constant dense<0.000000e+00> : vector<2x8x32xf32>
    %28 = tpu.matmul %27, %1, %cst_18 {dimension_numbers = #tpu.dot_dimension_numbers<[2], [1], [1], [2], [0, 0, 0, 1, 1, 2], [0], [0]>} : vector<2x8x8xf32>, vector<2x8x32xf32>, vector<2x8x32xf32> -> vector<2x8x32xf32>
    %29 = vector.shape_cast %28 : vector<2x8x32xf32> to vector<2x1x256xf32>
    %c0_19 = arith.constant 0 : index
    %c0_20 = arith.constant 0 : index
    %c0_21 = arith.constant 0 : index
    %30 = vector.load %arg7[%c0_19, %c0_20, %c0_21] : memref<2x1x256xf32, #tpu.memory_space<vmem>>, vector<2x1x256xf32>
    tpu.vector_store %arg7[%c0_19, %c0_20, %c0_21], %29 {strides = array<i32>} : memref<2x1x256xf32, #tpu.memory_space<vmem>>, vector<2x1x256xf32>,
    return
  }
  func.func @transform_0(%arg0: i32) -> (i32, i32, i32) {
    %c0_i32 = arith.constant 0 : i32
    %c0_i32_0 = arith.constant 0 : i32
    %c0_i32_1 = arith.constant 0 : i32
    return %arg0, %c0_i32, %c0_i32_0 : i32, i32, i32
  }
  func.func @transform_1(%arg0: i32) -> (i32, i32, i32) {
    %c0_i32 = arith.constant 0 : i32
    %c0_i32_0 = arith.constant 0 : i32
    %c0_i32_1 = arith.constant 0 : i32
    return %arg0, %c0_i32, %c0_i32_0 : i32, i32, i32
  }
  func.func @transform_2(%arg0: i32) -> (i32, i32) {
    %c0_i32 = arith.constant 0 : i32
    %c0_i32_0 = arith.constant 0 : i32
    %c0_i32_1 = arith.constant 0 : i32
    return %c0_i32, %c0_i32_0 : i32, i32
  }
  func.func @transform_3(%arg0: i32) -> (i32, i32) {
    %c0_i32 = arith.constant 0 : i32
    %c0_i32_0 = arith.constant 0 : i32
    %c0_i32_1 = arith.constant 0 : i32
    return %c0_i32, %c0_i32_0 : i32, i32
  }
  func.func @transform_4(%arg0: i32) -> (i32, i32) {
    %c0_i32 = arith.constant 0 : i32
    %c0_i32_0 = arith.constant 0 : i32
    %c0_i32_1 = arith.constant 0 : i32
    return %c0_i32, %c0_i32_0 : i32, i32
  }
  func.func @transform_5(%arg0: i32) -> (i32, i32) {
    %c0_i32 = arith.constant 0 : i32
    %c0_i32_0 = arith.constant 0 : i32
    %c0_i32_1 = arith.constant 0 : i32
    return %c0_i32, %c0_i32_0 : i32, i32
  }
  func.func @transform_6(%arg0: i32) -> (i32, i32, i32) {
    %c0_i32 = arith.constant 0 : i32
    %c0_i32_0 = arith.constant 0 : i32
    %c0_i32_1 = arith.constant 0 : i32
    return %arg0, %c0_i32, %c0_i32_0 : i32, i32, i32
  }
}

</mosaic_0001>

<llo_original>
// kernel: tpu_custom_call.1
$region0: #{tpu_custom_call.1}
  #allocation0 [shape = 'u32[]', space=smem, size = 0x4, offset = 0x4, fixed_abs, tag = 'smem constant byte address 0x4 - core index']
  #allocation1 [shape = 'u32[144,128]{1,0:T(1,128)}', space=vmem, size = 0x12000, scoped, tag = 'internal scratch']
  %s0 = inlined_call_operand.hbm [shape: f32[2,8,32], index: 0, kind: input, shape index: {}]
  %s1 = inlined_call_operand.hbm [shape: f32[2,8,32], index: 1, kind: input, shape index: {}]
  %s2 = inlined_call_operand.hbm [shape: f32[32,32], index: 2, kind: input, shape index: {}]
  %s3 = inlined_call_operand.vmem [shape: f32[1,32], index: 3, kind: input, shape index: {}]
  %s4 = inlined_call_operand.hbm [shape: f32[32,32], index: 4, kind: input, shape index: {}]
  %s5 = inlined_call_operand.vmem [shape: f32[1,32], index: 5, kind: input, shape index: {}]
  %s6 = inlined_call_operand.hbm [shape: f32[2,1,256], index: 6, kind: output, shape index: {}]
  %s7 = sld [smem:[#allocation0]]
  $region50: #{tpu_custom_call.1} parent=0
    _
  %s9 = ssub.s32 1, %s7
  %s10 = scalar_select 0, %s9, %s7
  $region1: #{tpu_custom_call.1} parent=0
    #allocation2 [shape = 'u8[8192]{0}', space=vmem, size = 0x2000, scoped, tag = 'input window, operand 0, single buffered']
    #allocation3 [shape = 's32[1]{0}', space=sflag, size = 0x4, scoped, tag = 'scoped memory for tpu_custom_call.1']
    #allocation4 [shape = 's32[1]{0}', space=sflag, size = 0x4, scoped, tag = 'scoped memory for tpu_custom_call.1']
    #allocation5 [shape = 'u8[8192]{0}', space=vmem, size = 0x2000, scoped, tag = 'input window, operand 1, single buffered']
    #allocation6 [shape = 's32[1]{0}', space=sflag, size = 0x4, scoped, tag = 'scoped memory for tpu_custom_call.1']
    #allocation7 [shape = 'u8[16384]{0}', space=vmem, size = 0x4000, scoped, tag = 'input window, operand 2, single buffered']
    #allocation8 [shape = 'u8[16384]{0}', space=vmem, size = 0x4000, scoped, tag = 'input window, operand 4, single buffered']
    #allocation9 [shape = 's32[1]{0}', space=sflag, size = 0x4, scoped, tag = 'scoped memory for tpu_custom_call.1']
    #allocation10 [shape = 'u8[2048]{0}', space=vmem, size = 0x800, scoped, tag = 'output window, operand 0, single buffered']
    %11 = vsyncpa [#allocation3], 0
    %12 = vsyncpa [#allocation6], 0
    %13 = vsyncpa [#allocation9], 0
    %14 = vsyncpa [#allocation4], 0
    // Predicated region
    $region2: #{tpu_custom_call.1} parent=1 // pred_check
      _
    $region3: #{tpu_custom_call.1} parent=1 // pred_check_branch
      %16 = sbr.rel (0) target = $region5
    $region4: #{tpu_custom_call.1} parent=1 // pred_region
      %s18 = ssub.s32 256, 256
      %19 = vsyncadd [#allocation3], %s18
      %s20 = sshll.u32 [#allocation2], 4
      %s21 = int_to_ptr.vmem [resolvable:$true] %s20
      %26 = dma.hbm_to_vmem [thread:$0]  %s0, 256, %s21, [#allocation3], 128, 128, 8
    $region5: #{tpu_custom_call.1} parent=1 // pred_fallthru
      _
    // Predicated region
    $region6: #{tpu_custom_call.1} parent=1 // pred_check
      _
    $region7: #{tpu_custom_call.1} parent=1 // pred_check_branch
      %28 = sbr.rel (0) target = $region9
    $region8: #{tpu_custom_call.1} parent=1 // pred_region
      %s30 = ssub.s32 256, 256
      %31 = vsyncadd [#allocation6], %s30
      %s32 = sshll.u32 [#allocation5], 4
      %s33 = int_to_ptr.vmem [resolvable:$true] %s32
      %38 = dma.hbm_to_vmem [thread:$0]  %s1, 256, %s33, [#allocation6], 128, 128, 8
    $region9: #{tpu_custom_call.1} parent=1 // pred_fallthru
      _
    // Predicated region
    $region10: #{tpu_custom_call.1} parent=1 // pred_check
      _
    $region11: #{tpu_custom_call.1} parent=1 // pred_check_branch
      %40 = sbr.rel (0) target = $region13
    $region12: #{tpu_custom_call.1} parent=1 // pred_region
      %s42 = ssub.s32 512, 512
      %43 = vsyncadd [#allocation6], %s42
      %s44 = sshll.u32 [#allocation7], 4
      %s45 = int_to_ptr.vmem [resolvable:$true] %s44
      %50 = dma.hbm_to_vmem [thread:$0]  %s2, 512, %s45, [#allocation6], 128, 128, 8
    $region13: #{tpu_custom_call.1} parent=1 // pred_fallthru
      _
    // Predicated region
    $region14: #{tpu_custom_call.1} parent=1 // pred_check
      _
    $region15: #{tpu_custom_call.1} parent=1 // pred_check_branch
      %52 = sbr.rel (0) target = $region17
    $region16: #{tpu_custom_call.1} parent=1 // pred_region
      _
    $region17: #{tpu_custom_call.1} parent=1 // pred_fallthru
      _
    // Predicated region
    $region18: #{tpu_custom_call.1} parent=1 // pred_check
      _
    $region19: #{tpu_custom_call.1} parent=1 // pred_check_branch
      %54 = sbr.rel (0) target = $region21
    $region20: #{tpu_custom_call.1} parent=1 // pred_region
      %s56 = ssub.s32 512, 512
      %57 = vsyncadd [#allocation9], %s56
      %s58 = sshll.u32 [#allocation8], 4
      %s59 = int_to_ptr.vmem [resolvable:$true] %s58
      %64 = dma.hbm_to_vmem [thread:$0]  %s4, 512, %s59, [#allocation9], 128, 128, 8
    $region21: #{tpu_custom_call.1} parent=1 // pred_fallthru
      _
    // Predicated region
    $region22: #{tpu_custom_call.1} parent=1 // pred_check
      _
    $region23: #{tpu_custom_call.1} parent=1 // pred_check_branch
      %66 = sbr.rel (0) target = $region25
    $region24: #{tpu_custom_call.1} parent=1 // pred_region
      _
    $region25: #{tpu_custom_call.1} parent=1 // pred_fallthru
      _
    // Predicated region
    $region26: #{tpu_custom_call.1} parent=1 // pred_check
      _
    $region27: #{tpu_custom_call.1} parent=1 // pred_check_branch
      %68 = sbr.rel (0) target = $region29
    $region28: #{tpu_custom_call.1} parent=1 // pred_region
      %69 = dma.done [#allocation3], 256
    $region29: #{tpu_custom_call.1} parent=1 // pred_fallthru
      _
    // Predicated region
    $region30: #{tpu_custom_call.1} parent=1 // pred_check
      _
    $region31: #{tpu_custom_call.1} parent=1 // pred_check_branch
      %71 = sbr.rel (0) target = $region33
    $region32: #{tpu_custom_call.1} parent=1 // pred_region
      %72 = dma.done [#allocation6], 256
    $region33: #{tpu_custom_call.1} parent=1 // pred_fallthru
      _
    // Predicated region
    $region34: #{tpu_custom_call.1} parent=1 // pred_check
      _
    $region35: #{tpu_custom_call.1} parent=1 // pred_check_branch
      %74 = sbr.rel (0) target = $region37
    $region36: #{tpu_custom_call.1} parent=1 // pred_region
      %75 = dma.done [#allocation6], 512
    $region37: #{tpu_custom_call.1} parent=1 // pred_fallthru
      _
    // Predicated region
    $region38: #{tpu_custom_call.1} parent=1 // pred_check
      _
    $region39: #{tpu_custom_call.1} parent=1 // pred_check_branch
      %77 = sbr.rel (0) target = $region41
    $region40: #{tpu_custom_call.1} parent=1 // pred_region
      %78 = dma.done [#allocation9], 512
    $region41: #{tpu_custom_call.1} parent=1 // pred_fallthru
      _
    %v79 = vld [vmem:[#allocation2] sm:$0xff]
    %v80 = vld [vmem:[#allocation2 + $0x8] sm:$0xff]
    %v81 = vld [vmem:[#allocation5] sm:$0xff]
    %v82 = vld [vmem:[#allocation5 + $0x8] sm:$0xff]
    %v83 = vld [vmem:[%s3] sm:$0x1]
    %v84 = vld [vmem:[%s5] sm:$0x1]
    %v85 = vld [vmem:[#allocation7] sm:$0xff]
    %v86 = vld [vmem:[#allocation7 + $0x8] sm:$0xff]
    %v87 = vld [vmem:[#allocation7 + $0x10] sm:$0xff]
    %v88 = vld [vmem:[#allocation7 + $0x18] sm:$0xff]
    %v90 = vlaneseq
    %v91 = vshrl.u32 %v90, 7
    %v92 = vsub.s32 0, %v91
    %v93 = vrot.slane %v83, %v92
    %vm95 = vcmask 261120
    %v97 = vsel %vm95, %v79, 0
    %v100 = vsel %vm95, %v80, 0
    %102 = vmatprep.subr.mxu0 0.0
    %103 = vmatpush1.msra.mxu0 %v85
    %104 = vmatprep.subr.mxu0 0.0
    %105 = vmatpush1.msra.mxu0 %v86
    %106 = vmatprep.subr.mxu0 0.0
    %107 = vmatpush1.msra.mxu0 %v87
    %108 = vmatprep.subr.mxu0 0.0
    %109 = vmatpush1.msra.mxu0 %v88
    %110 = vmatprep.subr.mxu0 0.0
    %111 = vmatpush1.msra.mxu0 0.0
    %112 = vmatprep.subr.mxu0 0.0
    %113 = vmatpush1.msra.mxu0 0.0
    %114 = vmatprep.subr.mxu0 0.0
    %115 = vmatpush1.msra.mxu0 0.0
    %116 = vmatprep.subr.mxu0 0.0
    %117 = vmatpush1.msra.mxu0 0.0
    %118 = vmatprep.subr.mxu0 0.0
    %119 = vmatpush1.msra.mxu0 0.0
    %120 = vmatprep.subr.mxu0 0.0
    %121 = vmatpush1.msra.mxu0 0.0
    %122 = vmatprep.subr.mxu0 0.0
    %123 = vmatpush1.msra.mxu0 0.0
    %124 = vmatprep.subr.mxu0 0.0
    %125 = vmatpush1.msra.mxu0 0.0
    %126 = vmatprep.subr.mxu0 0.0
    %127 = vmatpush1.msra.mxu0 0.0
    %128 = vmatprep.subr.mxu0 0.0
    %129 = vmatpush1.msra.mxu0 0.0
    %130 = vmatprep.subr.mxu0 0.0
    %131 = vmatpush1.msra.mxu0 0.0
    %132 = vmatprep.subr.mxu0 0.0
    %133 = vmatpush1.msra.mxu0 0.0
    %134 = vmatprep.subr.mxu0 0.0
    %135 = vmatpush1.msra.mxu0 0.0
    %136 = vmatprep.subr.mxu0 0.0
    %137 = vmatpush1.msra.mxu0 0.0
    %138 = vmatprep.subr.mxu0 0.0
    %139 = vmatpush1.msra.mxu0 0.0
    %140 = vmatprep.subr.mxu0 0.0
    %141 = vmatpush1.msra.mxu0 0.0
    %142 = vmatprep.subr.mxu0 0.0
    %143 = vmatpush1.msra.mxu0 0.0
    %144 = vmatprep.subr.mxu0 0.0
    %145 = vmatpush1.msra.mxu0 0.0
    %146 = vmatprep.subr.mxu0 0.0
    %147 = vmatpush1.msra.mxu0 0.0
    %148 = vmatprep.subr.mxu0 0.0
    %149 = vmatpush1.msra.mxu0 0.0
    %150 = vmatprep.subr.mxu0 0.0
    %151 = vmatpush1.msra.mxu0 0.0
    %152 = vmatprep.subr.mxu0 0.0
    %153 = vmatpush1.msra.mxu0 0.0
    %154 = vmatprep.subr.mxu0 0.0
    %155 = vmatpush1.msra.mxu0 0.0
    %156 = vmatprep.subr.mxu0 0.0
    %157 = vmatpush1.msra.mxu0 0.0
    %158 = vmatprep.subr.mxu0 0.0
    %159 = vmatpush1.msra.mxu0 0.0
    %160 = vmatprep.subr.mxu0 0.0
    %161 = vmatpush1.msra.mxu0 0.0
    %162 = vmatprep.subr.mxu0 0.0
    %163 = vmatpush1.msra.mxu0 0.0
    %164 = vmatprep.subr.mxu0 0.0
    %165 = vmatpush1.msra.mxu0 0.0
    %166 = vmatprep.mubr.f32.mxu0 0.0
    %167 = vmatmul.mubr.f32.gmra.mrb[0].mxu0 %v97
    %v168 = vpop.f32.mrb[0].mxu0
    %v169 = vadd.f32 %v93, %v168
    %v170 = vpop.f32.mrb[0].mxu0
    %171 = vmatprep.mubr.f32.mxu0 0.0
    %172 = vmatmul.mubr.f32.gmra.mrb[0].mxu0 %v100
    %v173 = vpop.f32.mrb[0].mxu0
    %v174 = vadd.f32 %v93, %v173
    %v175 = vpop.f32.mrb[0].mxu0
    %176 = vdwg.mxu0
    %v177 = vmul.f32 %v169, 0.17677669
    %v178 = vmul.f32 %v174, 0.17677669
    %v179 = vld [vmem:[#allocation8] sm:$0xff]
    %v180 = vld [vmem:[#allocation8 + $0x8] sm:$0xff]
    %v181 = vld [vmem:[#allocation8 + $0x10] sm:$0xff]
    %v182 = vld [vmem:[#allocation8 + $0x18] sm:$0xff]
    %v184 = vlaneseq
    %v185 = vshrl.u32 %v184, 7
    %v186 = vsub.s32 0, %v185
    %v187 = vrot.slane %v84, %v186
    %v190 = vsel %vm95, %v81, 0
    %v193 = vsel %vm95, %v82, 0
    %195 = vmatprep.subr.mxu0 0.0
    %196 = vmatpush1.msra.mxu0 %v179
    %197 = vmatprep.subr.mxu0 0.0
    %198 = vmatpush1.msra.mxu0 %v180
    %199 = vmatprep.subr.mxu0 0.0
    %200 = vmatpush1.msra.mxu0 %v181
    %201 = vmatprep.subr.mxu0 0.0
    %202 = vmatpush1.msra.mxu0 %v182
    %203 = vmatprep.subr.mxu0 0.0
    %204 = vmatpush1.msra.mxu0 0.0
    %205 = vmatprep.subr.mxu0 0.0
    %206 = vmatpush1.msra.mxu0 0.0
    %207 = vmatprep.subr.mxu0 0.0
    %208 = vmatpush1.msra.mxu0 0.0
    %209 = vmatprep.subr.mxu0 0.0
    %210 = vmatpush1.msra.mxu0 0.0
    %211 = vmatprep.subr.mxu0 0.0
    %212 = vmatpush1.msra.mxu0 0.0
    %213 = vmatprep.subr.mxu0 0.0
    %214 = vmatpush1.msra.mxu0 0.0
    %215 = vmatprep.subr.mxu0 0.0
    %216 = vmatpush1.msra.mxu0 0.0
    %217 = vmatprep.subr.mxu0 0.0
    %218 = vmatpush1.msra.mxu0 0.0
    %219 = vmatprep.subr.mxu0 0.0
    %220 = vmatpush1.msra.mxu0 0.0
    %221 = vmatprep.subr.mxu0 0.0
    %222 = vmatpush1.msra.mxu0 0.0
    %223 = vmatprep.subr.mxu0 0.0
    %224 = vmatpush1.msra.mxu0 0.0
    %225 = vmatprep.subr.mxu0 0.0
    %226 = vmatpush1.msra.mxu0 0.0
    %227 = vmatprep.subr.mxu0 0.0
    %228 = vmatpush1.msra.mxu0 0.0
    %229 = vmatprep.subr.mxu0 0.0
    %230 = vmatpush1.msra.mxu0 0.0
    %231 = vmatprep.subr.mxu0 0.0
    %232 = vmatpush1.msra.mxu0 0.0
    %233 = vmatprep.subr.mxu0 0.0
    %234 = vmatpush1.msra.mxu0 0.0
    %235 = vmatprep.subr.mxu0 0.0
    %236 = vmatpush1.msra.mxu0 0.0
    %237 = vmatprep.subr.mxu0 0.0
    %238 = vmatpush1.msra.mxu0 0.0
    %239 = vmatprep.subr.mxu0 0.0
    %240 = vmatpush1.msra.mxu0 0.0
    %241 = vmatprep.subr.mxu0 0.0
    %242 = vmatpush1.msra.mxu0 0.0
    %243 = vmatprep.subr.mxu0 0.0
    %244 = vmatpush1.msra.mxu0 0.0
    %245 = vmatprep.subr.mxu0 0.0
    %246 = vmatpush1.msra.mxu0 0.0
    %247 = vmatprep.subr.mxu0 0.0
    %248 = vmatpush1.msra.mxu0 0.0
    %249 = vmatprep.subr.mxu0 0.0
    %250 = vmatpush1.msra.mxu0 0.0
    %251 = vmatprep.subr.mxu0 0.0
    %252 = vmatpush1.msra.mxu0 0.0
    %253 = vmatprep.subr.mxu0 0.0
    %254 = vmatpush1.msra.mxu0 0.0
    %255 = vmatprep.subr.mxu0 0.0
    %256 = vmatpush1.msra.mxu0 0.0
    %257 = vmatprep.subr.mxu0 0.0
    %258 = vmatpush1.msra.mxu0 0.0
    %259 = vmatprep.mubr.f32.mxu0 0.0
    %260 = vmatmul.mubr.f32.gmra.mrb[0].mxu0 %v190
    %v261 = vpop.f32.mrb[0].mxu0
    %v262 = vadd.f32 %v187, %v261
    %v263 = vpop.f32.mrb[0].mxu0
    %264 = vmatprep.mubr.f32.mxu0 0.0
    %265 = vmatmul.mubr.f32.gmra.mrb[0].mxu0 %v193
    %v266 = vpop.f32.mrb[0].mxu0
    %v267 = vadd.f32 %v187, %v266
    %v268 = vpop.f32.mrb[0].mxu0
    %269 = vdwg.mxu0
    %v271 = vsel %vm95, %v177, 0
    %v274 = vsel %vm95, %v262, 0
    %276 = vmatprep.subr.mxu0 0.0
    %277 = vmatpush1.xpose.msra.mxu0 %v274
    %278 = vmatprep.subr.mxu0 0.0
    %279 = vmatpush1.xpose.msra.mxu0 0.0
    %280 = vmatprep.subr.mxu0 0.0
    %281 = vmatpush1.xpose.msra.mxu0 0.0
    %282 = vmatprep.subr.mxu0 0.0
    %283 = vmatpush1.xpose.msra.mxu0 0.0
    %284 = vmatprep.subr.mxu0 0.0
    %285 = vmatpush1.xpose.msra.mxu0 0.0
    %286 = vmatprep.subr.mxu0 0.0
    %287 = vmatpush1.xpose.msra.mxu0 0.0
    %288 = vmatprep.subr.mxu0 0.0
    %289 = vmatpush1.xpose.msra.mxu0 0.0
    %290 = vmatprep.subr.mxu0 0.0
    %291 = vmatpush1.xpose.msra.mxu0 0.0
    %292 = vmatprep.subr.mxu0 0.0
    %293 = vmatpush1.xpose.msra.mxu0 0.0
    %294 = vmatprep.subr.mxu0 0.0
    %295 = vmatpush1.xpose.msra.mxu0 0.0
    %296 = vmatprep.subr.mxu0 0.0
    %297 = vmatpush1.xpose.msra.mxu0 0.0
    %298 = vmatprep.subr.mxu0 0.0
    %299 = vmatpush1.xpose.msra.mxu0 0.0
    %300 = vmatprep.subr.mxu0 0.0
    %301 = vmatpush1.xpose.msra.mxu0 0.0
    %302 = vmatprep.subr.mxu0 0.0
    %303 = vmatpush1.xpose.msra.mxu0 0.0
    %304 = vmatprep.subr.mxu0 0.0
    %305 = vmatpush1.xpose.msra.mxu0 0.0
    %306 = vmatprep.subr.mxu0 0.0
    %307 = vmatpush1.xpose.msra.mxu0 0.0
    %308 = vmatprep.subr.mxu0 0.0
    %309 = vmatpush1.xpose.msra.mxu0 0.0
    %310 = vmatprep.subr.mxu0 0.0
    %311 = vmatpush1.xpose.msra.mxu0 0.0
    %312 = vmatprep.subr.mxu0 0.0
    %313 = vmatpush1.xpose.msra.mxu0 0.0
    %314 = vmatprep.subr.mxu0 0.0
    %315 = vmatpush1.xpose.msra.mxu0 0.0
    %316 = vmatprep.subr.mxu0 0.0
    %317 = vmatpush1.xpose.msra.mxu0 0.0
    %318 = vmatprep.subr.mxu0 0.0
    %319 = vmatpush1.xpose.msra.mxu0 0.0
    %320 = vmatprep.subr.mxu0 0.0
    %321 = vmatpush1.xpose.msra.mxu0 0.0
    %322 = vmatprep.subr.mxu0 0.0
    %323 = vmatpush1.xpose.msra.mxu0 0.0
    %324 = vmatprep.subr.mxu0 0.0
    %325 = vmatpush1.xpose.msra.mxu0 0.0
    %326 = vmatprep.subr.mxu0 0.0
    %327 = vmatpush1.xpose.msra.mxu0 0.0
    %328 = vmatprep.subr.mxu0 0.0
    %329 = vmatpush1.xpose.msra.mxu0 0.0
    %330 = vmatprep.subr.mxu0 0.0
    %331 = vmatpush1.xpose.msra.mxu0 0.0
    %332 = vmatprep.subr.mxu0 0.0
    %333 = vmatpush1.xpose.msra.mxu0 0.0
    %334 = vmatprep.subr.mxu0 0.0
    %335 = vmatpush1.xpose.msra.mxu0 0.0
    %336 = vmatprep.subr.mxu0 0.0
    %337 = vmatpush1.xpose.msra.mxu0 0.0
    %338 = vmatprep.subr.mxu0 0.0
    %339 = vmatpush1.xpose.msra.mxu0 0.0
    %340 = vmatprep.mubr.f32.mxu0 0.0
    %341 = vmatmul.mubr.f32.gmra.mrb[0].mxu0 %v271
    %v342 = vpop.f32.mrb[0].mxu0
    %v343 = vadd.f32 0.0, %v342
    %v344 = vpop.f32.mrb[0].mxu0
    %345 = vdwg.mxu0
    %v347 = vsel %vm95, %v178, 0
    %v350 = vsel %vm95, %v267, 0
    %352 = vmatprep.subr.mxu0 0.0
    %353 = vmatpush1.xpose.msra.mxu0 %v350
    %354 = vmatprep.subr.mxu0 0.0
    %355 = vmatpush1.xpose.msra.mxu0 0.0
    %356 = vmatprep.subr.mxu0 0.0
    %357 = vmatpush1.xpose.msra.mxu0 0.0
    %358 = vmatprep.subr.mxu0 0.0
    %359 = vmatpush1.xpose.msra.mxu0 0.0
    %360 = vmatprep.subr.mxu0 0.0
    %361 = vmatpush1.xpose.msra.mxu0 0.0
    %362 = vmatprep.subr.mxu0 0.0
    %363 = vmatpush1.xpose.msra.mxu0 0.0
    %364 = vmatprep.subr.mxu0 0.0
    %365 = vmatpush1.xpose.msra.mxu0 0.0
    %366 = vmatprep.subr.mxu0 0.0
    %367 = vmatpush1.xpose.msra.mxu0 0.0
    %368 = vmatprep.subr.mxu0 0.0
    %369 = vmatpush1.xpose.msra.mxu0 0.0
    %370 = vmatprep.subr.mxu0 0.0
    %371 = vmatpush1.xpose.msra.mxu0 0.0
    %372 = vmatprep.subr.mxu0 0.0
    %373 = vmatpush1.xpose.msra.mxu0 0.0
    %374 = vmatprep.subr.mxu0 0.0
    %375 = vmatpush1.xpose.msra.mxu0 0.0
    %376 = vmatprep.subr.mxu0 0.0
    %377 = vmatpush1.xpose.msra.mxu0 0.0
    %378 = vmatprep.subr.mxu0 0.0
    %379 = vmatpush1.xpose.msra.mxu0 0.0
    %380 = vmatprep.subr.mxu0 0.0
    %381 = vmatpush1.xpose.msra.mxu0 0.0
    %382 = vmatprep.subr.mxu0 0.0
    %383 = vmatpush1.xpose.msra.mxu0 0.0
    %384 = vmatprep.subr.mxu0 0.0
    %385 = vmatpush1.xpose.msra.mxu0 0.0
    %386 = vmatprep.subr.mxu0 0.0
    %387 = vmatpush1.xpose.msra.mxu0 0.0
    %388 = vmatprep.subr.mxu0 0.0
    %389 = vmatpush1.xpose.msra.mxu0 0.0
    %390 = vmatprep.subr.mxu0 0.0
    %391 = vmatpush1.xpose.msra.mxu0 0.0
    %392 = vmatprep.subr.mxu0 0.0
    %393 = vmatpush1.xpose.msra.mxu0 0.0
    %394 = vmatprep.subr.mxu0 0.0
    %395 = vmatpush1.xpose.msra.mxu0 0.0
    %396 = vmatprep.subr.mxu0 0.0
    %397 = vmatpush1.xpose.msra.mxu0 0.0
    %398 = vmatprep.subr.mxu0 0.0
    %399 = vmatpush1.xpose.msra.mxu0 0.0
    %400 = vmatprep.subr.mxu0 0.0
    %401 = vmatpush1.xpose.msra.mxu0 0.0
    %402 = vmatprep.subr.mxu0 0.0
    %403 = vmatpush1.xpose.msra.mxu0 0.0
    %404 = vmatprep.subr.mxu0 0.0
    %405 = vmatpush1.xpose.msra.mxu0 0.0
    %406 = vmatprep.subr.mxu0 0.0
    %407 = vmatpush1.xpose.msra.mxu0 0.0
    %408 = vmatprep.subr.mxu0 0.0
    %409 = vmatpush1.xpose.msra.mxu0 0.0
    %410 = vmatprep.subr.mxu0 0.0
    %411 = vmatpush1.xpose.msra.mxu0 0.0
    %412 = vmatprep.subr.mxu0 0.0
    %413 = vmatpush1.xpose.msra.mxu0 0.0
    %414 = vmatprep.subr.mxu0 0.0
    %415 = vmatpush1.xpose.msra.mxu0 0.0
    %416 = vmatprep.mubr.f32.mxu0 0.0
    %417 = vmatmul.mubr.f32.gmra.mrb[0].mxu0 %v347
    %v418 = vpop.f32.mrb[0].mxu0
    %v419 = vadd.f32 0.0, %v418
    %v420 = vpop.f32.mrb[0].mxu0
    %421 = vdwg.mxu0
    %vm422 = vcmask 64512
    %v423 = vsel %vm422, %v343, -inf
    %424 = vmax.xlane.f32.xlu0 %v423
    %v425 = vpop.xlane.xlu0 %424
    %v426 = vsel %vm422, %v419, -inf
    %427 = vmax.xlane.f32.xlu0 %v426
    %v428 = vpop.xlane.xlu0 %427
    %v429 = vsub.f32 %v343, %v425
    %v430 = vsub.f32 %v419, %v428
    %v431 = vmul.f32 %v429, 1.442695
    %v432 = vpow.pop %v431
    %v433 = vmul.f32 %v430, 1.442695
    %v434 = vpow.pop %v433
    %v435 = vsel %vm422, %v432, 0.0
    %436 = vadd.xlane.f32.xlu0 %v435
    %v437 = vpop.xlane.xlu0 %436
    %v438 = vsel %vm422, %v434, 0.0
    %439 = vadd.xlane.f32.xlu0 %v438
    %v440 = vpop.xlane.xlu0 %439
    %v441 = vrcp.pop %v437
    %v442 = vmul.f32 %v432, %v441
    %v443 = vrcp.pop %v440
    %v444 = vmul.f32 %v434, %v443
    %v446 = vsel %vm422, %v442, 0
    %448 = vmatprep.subr.mxu0 0.0
    %449 = vmatpush1.msra.mxu0 %v81
    %450 = vmatprep.subr.mxu0 0.0
    %451 = vmatpush1.msra.mxu0 0.0
    %452 = vmatprep.subr.mxu0 0.0
    %453 = vmatpush1.msra.mxu0 0.0
    %454 = vmatprep.subr.mxu0 0.0
    %455 = vmatpush1.msra.mxu0 0.0
    %456 = vmatprep.subr.mxu0 0.0
    %457 = vmatpush1.msra.mxu0 0.0
    %458 = vmatprep.subr.mxu0 0.0
    %459 = vmatpush1.msra.mxu0 0.0
    %460 = vmatprep.subr.mxu0 0.0
    %461 = vmatpush1.msra.mxu0 0.0
    %462 = vmatprep.subr.mxu0 0.0
    %463 = vmatpush1.msra.mxu0 0.0
    %464 = vmatprep.subr.mxu0 0.0
    %465 = vmatpush1.msra.mxu0 0.0
    %466 = vmatprep.subr.mxu0 0.0
    %467 = vmatpush1.msra.mxu0 0.0
    %468 = vmatprep.subr.mxu0 0.0
    %469 = vmatpush1.msra.mxu0 0.0
    %470 = vmatprep.subr.mxu0 0.0
    %471 = vmatpush1.msra.mxu0 0.0
    %472 = vmatprep.subr.mxu0 0.0
    %473 = vmatpush1.msra.mxu0 0.0
    %474 = vmatprep.subr.mxu0 0.0
    %475 = vmatpush1.msra.mxu0 0.0
    %476 = vmatprep.subr.mxu0 0.0
    %477 = vmatpush1.msra.mxu0 0.0
    %478 = vmatprep.subr.mxu0 0.0
    %479 = vmatpush1.msra.mxu0 0.0
    %480 = vmatprep.subr.mxu0 0.0
    %481 = vmatpush1.msra.mxu0 0.0
    %482 = vmatprep.subr.mxu0 0.0
    %483 = vmatpush1.msra.mxu0 0.0
    %484 = vmatprep.subr.mxu0 0.0
    %485 = vmatpush1.msra.mxu0 0.0
    %486 = vmatprep.subr.mxu0 0.0
    %487 = vmatpush1.msra.mxu0 0.0
    %488 = vmatprep.subr.mxu0 0.0
    %489 = vmatpush1.msra.mxu0 0.0
    %490 = vmatprep.subr.mxu0 0.0
    %491 = vmatpush1.msra.mxu0 0.0
    %492 = vmatprep.subr.mxu0 0.0
    %493 = vmatpush1.msra.mxu0 0.0
    %494 = vmatprep.subr.mxu0 0.0
    %495 = vmatpush1.msra.mxu0 0.0
    %496 = vmatprep.subr.mxu0 0.0
    %497 = vmatpush1.msra.mxu0 0.0
    %498 = vmatprep.subr.mxu0 0.0
    %499 = vmatpush1.msra.mxu0 0.0
    %500 = vmatprep.subr.mxu0 0.0
    %501 = vmatpush1.msra.mxu0 0.0
    %502 = vmatprep.subr.mxu0 0.0
    %503 = vmatpush1.msra.mxu0 0.0
    %504 = vmatprep.subr.mxu0 0.0
    %505 = vmatpush1.msra.mxu0 0.0
    %506 = vmatprep.subr.mxu0 0.0
    %507 = vmatpush1.msra.mxu0 0.0
    %508 = vmatprep.subr.mxu0 0.0
    %509 = vmatpush1.msra.mxu0 0.0
    %510 = vmatprep.subr.mxu0 0.0
    %511 = vmatpush1.msra.mxu0 0.0
    %512 = vmatprep.mubr.f32.mxu0 0.0
    %513 = vmatmul.mubr.f32.gmra.mrb[0].mxu0 %v446
    %v514 = vpop.f32.mrb[0].mxu0
    %v515 = vadd.f32 0.0, %v514
    %v516 = vpop.f32.mrb[0].mxu0
    %517 = vdwg.mxu0
    %v519 = vsel %vm422, %v444, 0
    %521 = vmatprep.subr.mxu0 0.0
    %522 = vmatpush1.msra.mxu0 %v82
    %523 = vmatprep.subr.mxu0 0.0
    %524 = vmatpush1.msra.mxu0 0.0
    %525 = vmatprep.subr.mxu0 0.0
    %526 = vmatpush1.msra.mxu0 0.0
    %527 = vmatprep.subr.mxu0 0.0
    %528 = vmatpush1.msra.mxu0 0.0
    %529 = vmatprep.subr.mxu0 0.0
    %530 = vmatpush1.msra.mxu0 0.0
    %531 = vmatprep.subr.mxu0 0.0
    %532 = vmatpush1.msra.mxu0 0.0
    %533 = vmatprep.subr.mxu0 0.0
    %534 = vmatpush1.msra.mxu0 0.0
    %535 = vmatprep.subr.mxu0 0.0
    %536 = vmatpush1.msra.mxu0 0.0
    %537 = vmatprep.subr.mxu0 0.0
    %538 = vmatpush1.msra.mxu0 0.0
    %539 = vmatprep.subr.mxu0 0.0
    %540 = vmatpush1.msra.mxu0 0.0
    %541 = vmatprep.subr.mxu0 0.0
    %542 = vmatpush1.msra.mxu0 0.0
    %543 = vmatprep.subr.mxu0 0.0
    %544 = vmatpush1.msra.mxu0 0.0
    %545 = vmatprep.subr.mxu0 0.0
    %546 = vmatpush1.msra.mxu0 0.0
    %547 = vmatprep.subr.mxu0 0.0
    %548 = vmatpush1.msra.mxu0 0.0
    %549 = vmatprep.subr.mxu0 0.0
    %550 = vmatpush1.msra.mxu0 0.0
    %551 = vmatprep.subr.mxu0 0.0
    %552 = vmatpush1.msra.mxu0 0.0
    %553 = vmatprep.subr.mxu0 0.0
    %554 = vmatpush1.msra.mxu0 0.0
    %555 = vmatprep.subr.mxu0 0.0
    %556 = vmatpush1.msra.mxu0 0.0
    %557 = vmatprep.subr.mxu0 0.0
    %558 = vmatpush1.msra.mxu0 0.0
    %559 = vmatprep.subr.mxu0 0.0
    %560 = vmatpush1.msra.mxu0 0.0
    %561 = vmatprep.subr.mxu0 0.0
    %562 = vmatpush1.msra.mxu0 0.0
    %563 = vmatprep.subr.mxu0 0.0
    %564 = vmatpush1.msra.mxu0 0.0
    %565 = vmatprep.subr.mxu0 0.0
    %566 = vmatpush1.msra.mxu0 0.0
    %567 = vmatprep.subr.mxu0 0.0
    %568 = vmatpush1.msra.mxu0 0.0
    %569 = vmatprep.subr.mxu0 0.0
    %570 = vmatpush1.msra.mxu0 0.0
    %571 = vmatprep.subr.mxu0 0.0
    %572 = vmatpush1.msra.mxu0 0.0
    %573 = vmatprep.subr.mxu0 0.0
    %574 = vmatpush1.msra.mxu0 0.0
    %575 = vmatprep.subr.mxu0 0.0
    %576 = vmatpush1.msra.mxu0 0.0
    %577 = vmatprep.subr.mxu0 0.0
    %578 = vmatpush1.msra.mxu0 0.0
    %579 = vmatprep.subr.mxu0 0.0
    %580 = vmatpush1.msra.mxu0 0.0
    %581 = vmatprep.subr.mxu0 0.0
    %582 = vmatpush1.msra.mxu0 0.0
    %583 = vmatprep.subr.mxu0 0.0
    %584 = vmatpush1.msra.mxu0 0.0
    %585 = vmatprep.mubr.f32.mxu0 0.0
    %586 = vmatmul.mubr.f32.gmra.mrb[0].mxu0 %v519
    %v587 = vpop.f32.mrb[0].mxu0
    %v588 = vadd.f32 0.0, %v587
    %v589 = vpop.f32.mrb[0].mxu0
    %590 = vdwg.mxu0
    %v591 = vcombine.high %v515, 0.0
    %v593 = vunpack.c.l.s4 1983009808
    %v594 = vunpack.c.0.s8 %v593
    %v595 = vlaneseq
    %v596 = vshrl.u32 %v595, 7
    %v597 = vsub.s32 %v594, %v596
    %v598 = vrot.slane %v515, %v597
    %v600 = vunpack.c.l.s4 1983009808
    %v601 = vunpack.c.0.s8 %v600
    %v602 = vlaneseq
    %v603 = vshrl.u32 %v602, 7
    %v604 = vsub.s32 %v601, %v603
    %v605 = vrot.slane %v591, %v604
    %v606 = vcombine.high %v598, 0.0
    %v608 = vunpack.c.l.s4 1934713408
    %v609 = vunpack.c.0.s8 %v608
    %v610 = vlaneseq
    %v611 = vshrl.u32 %v610, 7
    %v612 = vsub.s32 %v609, %v611
    %v613 = vrot.slane %v598, %v612
    %v615 = vunpack.c.l.s4 1934713408
    %v616 = vunpack.c.0.s8 %v615
    %v617 = vlaneseq
    %v618 = vshrl.u32 %v617, 7
    %v619 = vsub.s32 %v616, %v618
    %v620 = vrot.slane %v606, %v619
    %v621 = vcombine.high %v605, 0.0
    %v623 = vunpack.c.l.s4 1934713408
    %v624 = vunpack.c.0.s8 %v623
    %v625 = vlaneseq
    %v626 = vshrl.u32 %v625, 7
    %v627 = vsub.s32 %v624, %v626
    %v628 = vrot.slane %v605, %v627
    %v630 = vunpack.c.l.s4 1934713408
    %v631 = vunpack.c.0.s8 %v630
    %v632 = vlaneseq
    %v633 = vshrl.u32 %v632, 7
    %v634 = vsub.s32 %v631, %v633
    %v635 = vrot.slane %v621, %v634
    %v636 = vcombine.high %v613, 0.0
    %v637 = vcombine.high %v620, 0.0
    %v638 = vcombine.high %v628, 0.0
    %v639 = vcombine.high %v635, 0.0
    %v640 = vcombine.high %v588, 0.0
    %v642 = vunpack.c.l.s4 1983009808
    %v643 = vunpack.c.0.s8 %v642
    %v644 = vlaneseq
    %v645 = vshrl.u32 %v644, 7
    %v646 = vsub.s32 %v643, %v645
    %v647 = vrot.slane %v588, %v646
    %v649 = vunpack.c.l.s4 1983009808
    %v650 = vunpack.c.0.s8 %v649
    %v651 = vlaneseq
    %v652 = vshrl.u32 %v651, 7
    %v653 = vsub.s32 %v650, %v652
    %v654 = vrot.slane %v640, %v653
    %v655 = vcombine.high %v647, 0.0
    %v657 = vunpack.c.l.s4 1934713408
    %v658 = vunpack.c.0.s8 %v657
    %v659 = vlaneseq
    %v660 = vshrl.u32 %v659, 7
    %v661 = vsub.s32 %v658, %v660
    %v662 = vrot.slane %v647, %v661
    %v664 = vunpack.c.l.s4 1934713408
    %v665 = vunpack.c.0.s8 %v664
    %v666 = vlaneseq
    %v667 = vshrl.u32 %v666, 7
    %v668 = vsub.s32 %v665, %v667
    %v669 = vrot.slane %v655, %v668
    %v670 = vcombine.high %v654, 0.0
    %v672 = vunpack.c.l.s4 1934713408
    %v673 = vunpack.c.0.s8 %v672
    %v674 = vlaneseq
    %v675 = vshrl.u32 %v674, 7
    %v676 = vsub.s32 %v673, %v675
    %v677 = vrot.slane %v654, %v676
    %v679 = vunpack.c.l.s4 1934713408
    %v680 = vunpack.c.0.s8 %v679
    %v681 = vlaneseq
    %v682 = vshrl.u32 %v681, 7
    %v683 = vsub.s32 %v680, %v682
    %v684 = vrot.slane %v670, %v683
    %v685 = vcombine.high %v662, 0.0
    %v686 = vcombine.high %v669, 0.0
    %v687 = vcombine.high %v677, 0.0
    %v688 = vcombine.high %v684, 0.0
    %691 = vrot.lane.b32.xlu0 %v636, 32
    %v692 = vpop.permute.xlu0 %691
    %693 = vrot.lane.b32.xlu0 %v685, 32
    %v694 = vpop.permute.xlu0 %693
    %699 = vrot.lane.b32.xlu0 %v620, 64
    %v700 = vpop.permute.xlu0 %699
    %701 = vrot.lane.b32.xlu0 %v669, 64
    %v702 = vpop.permute.xlu0 %701
    %707 = vrot.lane.b32.xlu0 %v637, 96
    %v708 = vpop.permute.xlu0 %707
    %709 = vrot.lane.b32.xlu0 %v686, 96
    %v710 = vpop.permute.xlu0 %709
    %715 = vrot.lane.b32.xlu0 %v638, 32
    %v716 = vpop.permute.xlu0 %715
    %717 = vrot.lane.b32.xlu0 %v687, 32
    %v718 = vpop.permute.xlu0 %717
    %723 = vrot.lane.b32.xlu0 %v635, 64
    %v724 = vpop.permute.xlu0 %723
    %725 = vrot.lane.b32.xlu0 %v684, 64
    %v726 = vpop.permute.xlu0 %725
    %731 = vrot.lane.b32.xlu0 %v639, 96
    %v732 = vpop.permute.xlu0 %731
    %733 = vrot.lane.b32.xlu0 %v688, 96
    %v734 = vpop.permute.xlu0 %733
    %v737 = vsel %vm95, %v613, %v692
    %v738 = vsel %vm95, %v662, %v694
    %vm739 = vcmask 523264
    %v740 = vsel %vm739, %v737, %v700
    %v741 = vsel %vm739, %v738, %v702
    %vm742 = vcmask 785408
    %v743 = vsel %vm742, %v740, %v708
    %v744 = vsel %vm742, %v741, %v710
    %v745 = vsel %vm95, %v628, %v716
    %v746 = vsel %vm95, %v677, %v718
    %v747 = vsel %vm739, %v745, %v724
    %v748 = vsel %vm739, %v746, %v726
    %v749 = vsel %vm742, %v747, %v732
    %v750 = vsel %vm742, %v748, %v734
    %v755 = vcombine.low %v743, %v749
    %v757 = vunpack.c.l.s4 1966171168
    %v758 = vunpack.c.0.s8 %v757
    %v759 = vlaneseq
    %v760 = vshrl.u32 %v759, 7
    %v761 = vsub.s32 %v758, %v760
    %v762 = vrot.slane %v755, %v761
    %v764 = vunpack.c.l.s4 1966171168
    %v765 = vunpack.c.0.s8 %v764
    %v766 = vlaneseq
    %v767 = vshrl.u32 %v766, 7
    %v768 = vsub.s32 %v765, %v767
    %v769 = vrot.slane %v762, %v768
    %v770 = vcombine.low %v744, %v750
    %v772 = vunpack.c.l.s4 1966171168
    %v773 = vunpack.c.0.s8 %v772
    %v774 = vlaneseq
    %v775 = vshrl.u32 %v774, 7
    %v776 = vsub.s32 %v773, %v775
    %v777 = vrot.slane %v770, %v776
    %v779 = vunpack.c.l.s4 1966171168
    %v780 = vunpack.c.0.s8 %v779
    %v781 = vlaneseq
    %v782 = vshrl.u32 %v781, 7
    %v783 = vsub.s32 %v780, %v782
    %v784 = vrot.slane %v777, %v783
    %v787 = vlaneseq
    %vm788 = vcmp.ge.s32.totalorder %v787, 0
    %vm789 = vcmp.lt.s32.totalorder %v787, 256
    %vm790 = vmand %vm788, %vm789
    %791 = vst.msk [vmem:[#allocation10] sm:$0x3] %vm790, %v769
    %792 = vst.msk [vmem:[#allocation10 + $0x2] sm:$0x3] %vm790, %v784
    // Predicated region
    $region42: #{tpu_custom_call.1} parent=1 // pred_check
      _
    $region43: #{tpu_custom_call.1} parent=1 // pred_check_branch
      %794 = sbr.rel (0) target = $region45
    $region44: #{tpu_custom_call.1} parent=1 // pred_region
      %s796 = ssub.s32 64, 64
      %797 = vsyncadd [#allocation4], %s796
      %s798 = sshll.u32 [#allocation10], 4
      %s799 = int_to_ptr.vmem [resolvable:$true] %s798
      %804 = dma.vmem_to_hbm [thread:$0]  %s799, 64, %s6, [#allocation4], 32, 32, 2
    $region45: #{tpu_custom_call.1} parent=1 // pred_fallthru
      _
    // Predicated region
    $region46: #{tpu_custom_call.1} parent=1 // pred_check
      _
    $region47: #{tpu_custom_call.1} parent=1 // pred_check_branch
      %806 = sbr.rel (0) target = $region49
    $region48: #{tpu_custom_call.1} parent=1 // pred_region
      %807 = dma.done [#allocation4], 64
    $region49: #{tpu_custom_call.1} parent=1 // pred_fallthru
      _
    %808 = vsyncpa [#allocation3], 1
    %809 = vsyncpa [#allocation6], 1
    %810 = vsyncpa [#allocation9], 1
    %811 = vsyncpa [#allocation4], 1

// kernel: tpu_custom_call.1
$region0: #{tpu_custom_call.1}
  #allocation0 [shape = 'u32[]', space=smem, size = 0x4, offset = 0x4, fixed_abs, tag = 'smem constant byte address 0x4 - core index']
  #allocation1 [shape = 'u32[144,128]{1,0:T(1,128)}', space=vmem, size = 0x12000, scoped, tag = 'internal scratch']
  %s0 = inlined_call_operand.hbm [shape: f32[2,8,32], index: 0, kind: input, shape index: {}]
  %s1 = inlined_call_operand.hbm [shape: f32[2,8,32], index: 1, kind: input, shape index: {}]
  %s2 = inlined_call_operand.hbm [shape: f32[32,32], index: 2, kind: input, shape index: {}]
  %s3 = inlined_call_operand.vmem [shape: f32[1,32], index: 3, kind: input, shape index: {}]
  %s4 = inlined_call_operand.hbm [shape: f32[32,32], index: 4, kind: input, shape index: {}]
  %s5 = inlined_call_operand.vmem [shape: f32[1,32], index: 5, kind: input, shape index: {}]
  %s6 = inlined_call_operand.hbm [shape: f32[2,1,256], index: 6, kind: output, shape index: {}]
  %s7 = sld [smem:[#allocation0]]
  $region50: #{tpu_custom_call.1} parent=0
    _
  %s9 = ssub.s32 1, %s7
  %s10 = scalar_select 0, %s9, %s7
  $region1: #{tpu_custom_call.1} parent=0
    #allocation2 [shape = 'u8[8192]{0}', space=vmem, size = 0x2000, scoped, tag = 'input window, operand 0, single buffered']
    #allocation3 [shape = 's32[1]{0}', space=sflag, size = 0x4, scoped, tag = 'scoped memory for tpu_custom_call.1']
    #allocation4 [shape = 's32[1]{0}', space=sflag, size = 0x4, scoped, tag = 'scoped memory for tpu_custom_call.1']
    #allocation5 [shape = 'u8[8192]{0}', space=vmem, size = 0x2000, scoped, tag = 'input window, operand 1, single buffered']
    #allocation6 [shape = 's32[1]{0}', space=sflag, size = 0x4, scoped, tag = 'scoped memory for tpu_custom_call.1']
    #allocation7 [shape = 'u8[16384]{0}', space=vmem, size = 0x4000, scoped, tag = 'input window, operand 2, single buffered']
    #allocation8 [shape = 'u8[16384]{0}', space=vmem, size = 0x4000, scoped, tag = 'input window, operand 4, single buffered']
    #allocation9 [shape = 's32[1]{0}', space=sflag, size = 0x4, scoped, tag = 'scoped memory for tpu_custom_call.1']
    #allocation10 [shape = 'u8[2048]{0}', space=vmem, size = 0x800, scoped, tag = 'output window, operand 0, single buffered']
    %11 = vsyncpa [#allocation3], 0
    %12 = vsyncpa [#allocation6], 0
    %13 = vsyncpa [#allocation9], 0
    %14 = vsyncpa [#allocation4], 0
    // Predicated region
    $region2: #{tpu_custom_call.1} parent=1 // pred_check
      _
    $region3: #{tpu_custom_call.1} parent=1 // pred_check_branch
      %16 = sbr.rel (0) target = $region5
    $region4: #{tpu_custom_call.1} parent=1 // pred_region
      %s18 = ssub.s32 256, 256
      %19 = vsyncadd [#allocation3], %s18
      %s20 = sshll.u32 [#allocation2], 4
      %s21 = int_to_ptr.vmem [resolvable:$true] %s20
      %26 = dma.hbm_to_vmem [thread:$0]  %s0, 256, %s21, [#allocation3], 128, 128, 8
    $region5: #{tpu_custom_call.1} parent=1 // pred_fallthru
      _
    // Predicated region
    $region6: #{tpu_custom_call.1} parent=1 // pred_check
      _
    $region7: #{tpu_custom_call.1} parent=1 // pred_check_branch
      %28 = sbr.rel (0) target = $region9
    $region8: #{tpu_custom_call.1} parent=1 // pred_region
      %s30 = ssub.s32 256, 256
      %31 = vsyncadd [#allocation6], %s30
      %s32 = sshll.u32 [#allocation5], 4
      %s33 = int_to_ptr.vmem [resolvable:$true] %s32
      %38 = dma.hbm_to_vmem [thread:$0]  %s1, 256, %s33, [#allocation6], 128, 128, 8
    $region9: #{tpu_custom_call.1} parent=1 // pred_fallthru
      _
    // Predicated region
    $region10: #{tpu_custom_call.1} parent=1 // pred_check
      _
    $region11: #{tpu_custom_call.1} parent=1 // pred_check_branch
      %40 = sbr.rel (0) target = $region13
    $region12: #{tpu_custom_call.1} parent=1 // pred_region
      %s42 = ssub.s32 512, 512
      %43 = vsyncadd [#allocation6], %s42
      %s44 = sshll.u32 [#allocation7], 4
      %s45 = int_to_ptr.vmem [resolvable:$true] %s44
      %50 = dma.hbm_to_vmem [thread:$0]  %s2, 512, %s45, [#allocation6], 128, 128, 8
    $region13: #{tpu_custom_call.1} parent=1 // pred_fallthru
      _
    // Predicated region
    $region14: #{tpu_custom_call.1} parent=1 // pred_check
      _
    $region15: #{tpu_custom_call.1} parent=1 // pred_check_branch
      %52 = sbr.rel (0) target = $region17
    $region16: #{tpu_custom_call.1} parent=1 // pred_region
      _
    $region17: #{tpu_custom_call.1} parent=1 // pred_fallthru
      _
    // Predicated region
    $region18: #{tpu_custom_call.1} parent=1 // pred_check
      _
    $region19: #{tpu_custom_call.1} parent=1 // pred_check_branch
      %54 = sbr.rel (0) target = $region21
    $region20: #{tpu_custom_call.1} parent=1 // pred_region
      %s56 = ssub.s32 512, 512
      %57 = vsyncadd [#allocation9], %s56
      %s58 = sshll.u32 [#allocation8], 4
      %s59 = int_to_ptr.vmem [resolvable:$true] %s58
      %64 = dma.hbm_to_vmem [thread:$0]  %s4, 512, %s59, [#allocation9], 128, 128, 8
    $region21: #{tpu_custom_call.1} parent=1 // pred_fallthru
      _
    // Predicated region
    $region22: #{tpu_custom_call.1} parent=1 // pred_check
      _
    $region23: #{tpu_custom_call.1} parent=1 // pred_check_branch
      %66 = sbr.rel (0) target = $region25
    $region24: #{tpu_custom_call.1} parent=1 // pred_region
      _
    $region25: #{tpu_custom_call.1} parent=1 // pred_fallthru
      _
    // Predicated region
    $region26: #{tpu_custom_call.1} parent=1 // pred_check
      _
    $region27: #{tpu_custom_call.1} parent=1 // pred_check_branch
      %68 = sbr.rel (0) target = $region29
    $region28: #{tpu_custom_call.1} parent=1 // pred_region
      %69 = dma.done [#allocation3], 256
    $region29: #{tpu_custom_call.1} parent=1 // pred_fallthru
      _
    // Predicated region
    $region30: #{tpu_custom_call.1} parent=1 // pred_check
      _
    $region31: #{tpu_custom_call.1} parent=1 // pred_check_branch
      %71 = sbr.rel (0) target = $region33
    $region32: #{tpu_custom_call.1} parent=1 // pred_region
      %72 = dma.done [#allocation6], 256
    $region33: #{tpu_custom_call.1} parent=1 // pred_fallthru
      _
    // Predicated region
    $region34: #{tpu_custom_call.1} parent=1 // pred_check
      _
    $region35: #{tpu_custom_call.1} parent=1 // pred_check_branch
      %74 = sbr.rel (0) target = $region37
    $region36: #{tpu_custom_call.1} parent=1 // pred_region
      %75 = dma.done [#allocation6], 512
    $region37: #{tpu_custom_call.1} parent=1 // pred_fallthru
      _
    // Predicated region
    $region38: #{tpu_custom_call.1} parent=1 // pred_check
      _
    $region39: #{tpu_custom_call.1} parent=1 // pred_check_branch
      %77 = sbr.rel (0) target = $region41
    $region40: #{tpu_custom_call.1} parent=1 // pred_region
      %78 = dma.done [#allocation9], 512
    $region41: #{tpu_custom_call.1} parent=1 // pred_fallthru
      _
    %v79 = vld [vmem:[#allocation2] sm:$0xff]
    %v80 = vld [vmem:[#allocation2 + $0x8] sm:$0xff]
    %v81 = vld [vmem:[#allocation5] sm:$0xff]
    %v82 = vld [vmem:[#allocation5 + $0x8] sm:$0xff]
    %v83 = vld [vmem:[%s3] sm:$0x1]
    %v84 = vld [vmem:[%s5] sm:$0x1]
    %v85 = vld [vmem:[#allocation7] sm:$0xff]
    %v86 = vld [vmem:[#allocation7 + $0x8] sm:$0xff]
    %v87 = vld [vmem:[#allocation7 + $0x10] sm:$0xff]
    %v88 = vld [vmem:[#allocation7 + $0x18] sm:$0xff]
    %v90 = vlaneseq
    %v91 = vshrl.u32 %v90, 7
    %v92 = vsub.s32 0, %v91
    %v93 = vrot.slane %v83, %v92
    %vm95 = vcmask 261120
    %v97 = vsel %vm95, %v79, 0
    %v100 = vsel %vm95, %v80, 0
    %102 = vmatprep.subr.mxu0 0.0
    %103 = vmatpush1.msra.mxu0 %v85
    %104 = vmatprep.subr.mxu0 0.0
    %105 = vmatpush1.msra.mxu0 %v86
    %106 = vmatprep.subr.mxu0 0.0
    %107 = vmatpush1.msra.mxu0 %v87
    %108 = vmatprep.subr.mxu0 0.0
    %109 = vmatpush1.msra.mxu0 %v88
    %110 = vmatprep.subr.mxu0 0.0
    %111 = vmatpush1.msra.mxu0 0.0
    %112 = vmatprep.subr.mxu0 0.0
    %113 = vmatpush1.msra.mxu0 0.0
    %114 = vmatprep.subr.mxu0 0.0
    %115 = vmatpush1.msra.mxu0 0.0
    %116 = vmatprep.subr.mxu0 0.0
    %117 = vmatpush1.msra.mxu0 0.0
    %118 = vmatprep.subr.mxu0 0.0
    %119 = vmatpush1.msra.mxu0 0.0
    %120 = vmatprep.subr.mxu0 0.0
    %121 = vmatpush1.msra.mxu0 0.0
    %122 = vmatprep.subr.mxu0 0.0
    %123 = vmatpush1.msra.mxu0 0.0
    %124 = vmatprep.subr.mxu0 0.0
    %125 = vmatpush1.msra.mxu0 0.0
    %126 = vmatprep.subr.mxu0 0.0
    %127 = vmatpush1.msra.mxu0 0.0
    %128 = vmatprep.subr.mxu0 0.0
    %129 = vmatpush1.msra.mxu0 0.0
    %130 = vmatprep.subr.mxu0 0.0
    %131 = vmatpush1.msra.mxu0 0.0
    %132 = vmatprep.subr.mxu0 0.0
    %133 = vmatpush1.msra.mxu0 0.0
    %134 = vmatprep.subr.mxu0 0.0
    %135 = vmatpush1.msra.mxu0 0.0
    %136 = vmatprep.subr.mxu0 0.0
    %137 = vmatpush1.msra.mxu0 0.0
    %138 = vmatprep.subr.mxu0 0.0
    %139 = vmatpush1.msra.mxu0 0.0
    %140 = vmatprep.subr.mxu0 0.0
    %141 = vmatpush1.msra.mxu0 0.0
    %142 = vmatprep.subr.mxu0 0.0
    %143 = vmatpush1.msra.mxu0 0.0
    %144 = vmatprep.subr.mxu0 0.0
    %145 = vmatpush1.msra.mxu0 0.0
    %146 = vmatprep.subr.mxu0 0.0
    %147 = vmatpush1.msra.mxu0 0.0
    %148 = vmatprep.subr.mxu0 0.0
    %149 = vmatpush1.msra.mxu0 0.0
    %150 = vmatprep.subr.mxu0 0.0
    %151 = vmatpush1.msra.mxu0 0.0
    %152 = vmatprep.subr.mxu0 0.0
    %153 = vmatpush1.msra.mxu0 0.0
    %154 = vmatprep.subr.mxu0 0.0
    %155 = vmatpush1.msra.mxu0 0.0
    %156 = vmatprep.subr.mxu0 0.0
    %157 = vmatpush1.msra.mxu0 0.0
    %158 = vmatprep.subr.mxu0 0.0
    %159 = vmatpush1.msra.mxu0 0.0
    %160 = vmatprep.subr.mxu0 0.0
    %161 = vmatpush1.msra.mxu0 0.0
    %162 = vmatprep.subr.mxu0 0.0
    %163 = vmatpush1.msra.mxu0 0.0
    %164 = vmatprep.subr.mxu0 0.0
    %165 = vmatpush1.msra.mxu0 0.0
    %166 = vmatprep.mubr.f32.mxu0 0.0
    %167 = vmatmul.mubr.f32.gmra.mrb[0].mxu0 %v97
    %v168 = vpop.f32.mrb[0].mxu0
    %v169 = vadd.f32 %v93, %v168
    %v170 = vpop.f32.mrb[0].mxu0
    %171 = vmatprep.mubr.f32.mxu0 0.0
    %172 = vmatmul.mubr.f32.gmra.mrb[0].mxu0 %v100
    %v173 = vpop.f32.mrb[0].mxu0
    %v174 = vadd.f32 %v93, %v173
    %v175 = vpop.f32.mrb[0].mxu0
    %176 = vdwg.mxu0
    %v177 = vmul.f32 %v169, 0.17677669
    %v178 = vmul.f32 %v174, 0.17677669
    %v179 = vld [vmem:[#allocation8] sm:$0xff]
    %v180 = vld [vmem:[#allocation8 + $0x8] sm:$0xff]
    %v181 = vld [vmem:[#allocation8 + $0x10] sm:$0xff]
    %v182 = vld [vmem:[#allocation8 + $0x18] sm:$0xff]
    %v184 = vlaneseq
    %v185 = vshrl.u32 %v184, 7
    %v186 = vsub.s32 0, %v185
    %v187 = vrot.slane %v84, %v186
    %v190 = vsel %vm95, %v81, 0
    %v193 = vsel %vm95, %v82, 0
    %195 = vmatprep.subr.mxu0 0.0
    %196 = vmatpush1.msra.mxu0 %v179
    %197 = vmatprep.subr.mxu0 0.0
    %198 = vmatpush1.msra.mxu0 %v180
    %199 = vmatprep.subr.mxu0 0.0
    %200 = vmatpush1.msra.mxu0 %v181
    %201 = vmatprep.subr.mxu0 0.0
    %202 = vmatpush1.msra.mxu0 %v182
    %203 = vmatprep.subr.mxu0 0.0
    %204 = vmatpush1.msra.mxu0 0.0
    %205 = vmatprep.subr.mxu0 0.0
    %206 = vmatpush1.msra.mxu0 0.0
    %207 = vmatprep.subr.mxu0 0.0
    %208 = vmatpush1.msra.mxu0 0.0
    %209 = vmatprep.subr.mxu0 0.0
    %210 = vmatpush1.msra.mxu0 0.0
    %211 = vmatprep.subr.mxu0 0.0
    %212 = vmatpush1.msra.mxu0 0.0
    %213 = vmatprep.subr.mxu0 0.0
    %214 = vmatpush1.msra.mxu0 0.0
    %215 = vmatprep.subr.mxu0 0.0
    %216 = vmatpush1.msra.mxu0 0.0
    %217 = vmatprep.subr.mxu0 0.0
    %218 = vmatpush1.msra.mxu0 0.0
    %219 = vmatprep.subr.mxu0 0.0
    %220 = vmatpush1.msra.mxu0 0.0
    %221 = vmatprep.subr.mxu0 0.0
    %222 = vmatpush1.msra.mxu0 0.0
    %223 = vmatprep.subr.mxu0 0.0
    %224 = vmatpush1.msra.mxu0 0.0
    %225 = vmatprep.subr.mxu0 0.0
    %226 = vmatpush1.msra.mxu0 0.0
    %227 = vmatprep.subr.mxu0 0.0
    %228 = vmatpush1.msra.mxu0 0.0
    %229 = vmatprep.subr.mxu0 0.0
    %230 = vmatpush1.msra.mxu0 0.0
    %231 = vmatprep.subr.mxu0 0.0
    %232 = vmatpush1.msra.mxu0 0.0
    %233 = vmatprep.subr.mxu0 0.0
    %234 = vmatpush1.msra.mxu0 0.0
    %235 = vmatprep.subr.mxu0 0.0
    %236 = vmatpush1.msra.mxu0 0.0
    %237 = vmatprep.subr.mxu0 0.0
    %238 = vmatpush1.msra.mxu0 0.0
    %239 = vmatprep.subr.mxu0 0.0
    %240 = vmatpush1.msra.mxu0 0.0
    %241 = vmatprep.subr.mxu0 0.0
    %242 = vmatpush1.msra.mxu0 0.0
    %243 = vmatprep.subr.mxu0 0.0
    %244 = vmatpush1.msra.mxu0 0.0
    %245 = vmatprep.subr.mxu0 0.0
    %246 = vmatpush1.msra.mxu0 0.0
    %247 = vmatprep.subr.mxu0 0.0
    %248 = vmatpush1.msra.mxu0 0.0
    %249 = vmatprep.subr.mxu0 0.0
    %250 = vmatpush1.msra.mxu0 0.0
    %251 = vmatprep.subr.mxu0 0.0
    %252 = vmatpush1.msra.mxu0 0.0
    %253 = vmatprep.subr.mxu0 0.0
    %254 = vmatpush1.msra.mxu0 0.0
    %255 = vmatprep.subr.mxu0 0.0
    %256 = vmatpush1.msra.mxu0 0.0
    %257 = vmatprep.subr.mxu0 0.0
    %258 = vmatpush1.msra.mxu0 0.0
    %259 = vmatprep.mubr.f32.mxu0 0.0
    %260 = vmatmul.mubr.f32.gmra.mrb[0].mxu0 %v190
    %v261 = vpop.f32.mrb[0].mxu0
    %v262 = vadd.f32 %v187, %v261
    %v263 = vpop.f32.mrb[0].mxu0
    %264 = vmatprep.mubr.f32.mxu0 0.0
    %265 = vmatmul.mubr.f32.gmra.mrb[0].mxu0 %v193
    %v266 = vpop.f32.mrb[0].mxu0
    %v267 = vadd.f32 %v187, %v266
    %v268 = vpop.f32.mrb[0].mxu0
    %269 = vdwg.mxu0
    %v271 = vsel %vm95, %v177, 0
    %v274 = vsel %vm95, %v262, 0
    %276 = vmatprep.subr.mxu0 0.0
    %277 = vmatpush1.xpose.msra.mxu0 %v274
    %278 = vmatprep.subr.mxu0 0.0
    %279 = vmatpush1.xpose.msra.mxu0 0.0
    %280 = vmatprep.subr.mxu0 0.0
    %281 = vmatpush1.xpose.msra.mxu0 0.0
    %282 = vmatprep.subr.mxu0 0.0
    %283 = vmatpush1.xpose.msra.mxu0 0.0
    %284 = vmatprep.subr.mxu0 0.0
    %285 = vmatpush1.xpose.msra.mxu0 0.0
    %286 = vmatprep.subr.mxu0 0.0
    %287 = vmatpush1.xpose.msra.mxu0 0.0
    %288 = vmatprep.subr.mxu0 0.0
    %289 = vmatpush1.xpose.msra.mxu0 0.0
    %290 = vmatprep.subr.mxu0 0.0
    %291 = vmatpush1.xpose.msra.mxu0 0.0
    %292 = vmatprep.subr.mxu0 0.0
    %293 = vmatpush1.xpose.msra.mxu0 0.0
    %294 = vmatprep.subr.mxu0 0.0
    %295 = vmatpush1.xpose.msra.mxu0 0.0
    %296 = vmatprep.subr.mxu0 0.0
    %297 = vmatpush1.xpose.msra.mxu0 0.0
    %298 = vmatprep.subr.mxu0 0.0
    %299 = vmatpush1.xpose.msra.mxu0 0.0
    %300 = vmatprep.subr.mxu0 0.0
    %301 = vmatpush1.xpose.msra.mxu0 0.0
    %302 = vmatprep.subr.mxu0 0.0
    %303 = vmatpush1.xpose.msra.mxu0 0.0
    %304 = vmatprep.subr.mxu0 0.0
    %305 = vmatpush1.xpose.msra.mxu0 0.0
    %306 = vmatprep.subr.mxu0 0.0
    %307 = vmatpush1.xpose.msra.mxu0 0.0
    %308 = vmatprep.subr.mxu0 0.0
    %309 = vmatpush1.xpose.msra.mxu0 0.0
    %310 = vmatprep.subr.mxu0 0.0
    %311 = vmatpush1.xpose.msra.mxu0 0.0
    %312 = vmatprep.subr.mxu0 0.0
    %313 = vmatpush1.xpose.msra.mxu0 0.0
    %314 = vmatprep.subr.mxu0 0.0
    %315 = vmatpush1.xpose.msra.mxu0 0.0
    %316 = vmatprep.subr.mxu0 0.0
    %317 = vmatpush1.xpose.msra.mxu0 0.0
    %318 = vmatprep.subr.mxu0 0.0
    %319 = vmatpush1.xpose.msra.mxu0 0.0
    %320 = vmatprep.subr.mxu0 0.0
    %321 = vmatpush1.xpose.msra.mxu0 0.0
    %322 = vmatprep.subr.mxu0 0.0
    %323 = vmatpush1.xpose.msra.mxu0 0.0
    %324 = vmatprep.subr.mxu0 0.0
    %325 = vmatpush1.xpose.msra.mxu0 0.0
    %326 = vmatprep.subr.mxu0 0.0
    %327 = vmatpush1.xpose.msra.mxu0 0.0
    %328 = vmatprep.subr.mxu0 0.0
    %329 = vmatpush1.xpose.msra.mxu0 0.0
    %330 = vmatprep.subr.mxu0 0.0
    %331 = vmatpush1.xpose.msra.mxu0 0.0
    %332 = vmatprep.subr.mxu0 0.0
    %333 = vmatpush1.xpose.msra.mxu0 0.0
    %334 = vmatprep.subr.mxu0 0.0
    %335 = vmatpush1.xpose.msra.mxu0 0.0
    %336 = vmatprep.subr.mxu0 0.0
    %337 = vmatpush1.xpose.msra.mxu0 0.0
    %338 = vmatprep.subr.mxu0 0.0
    %339 = vmatpush1.xpose.msra.mxu0 0.0
    %340 = vmatprep.mubr.f32.mxu0 0.0
    %341 = vmatmul.mubr.f32.gmra.mrb[0].mxu0 %v271
    %v342 = vpop.f32.mrb[0].mxu0
    %v343 = vadd.f32 0.0, %v342
    %v344 = vpop.f32.mrb[0].mxu0
    %345 = vdwg.mxu0
    %v347 = vsel %vm95, %v178, 0
    %v350 = vsel %vm95, %v267, 0
    %352 = vmatprep.subr.mxu0 0.0
    %353 = vmatpush1.xpose.msra.mxu0 %v350
    %354 = vmatprep.subr.mxu0 0.0
    %355 = vmatpush1.xpose.msra.mxu0 0.0
    %356 = vmatprep.subr.mxu0 0.0
    %357 = vmatpush1.xpose.msra.mxu0 0.0
    %358 = vmatprep.subr.mxu0 0.0
    %359 = vmatpush1.xpose.msra.mxu0 0.0
    %360 = vmatprep.subr.mxu0 0.0
    %361 = vmatpush1.xpose.msra.mxu0 0.0
    %362 = vmatprep.subr.mxu0 0.0
    %363 = vmatpush1.xpose.msra.mxu0 0.0
    %364 = vmatprep.subr.mxu0 0.0
    %365 = vmatpush1.xpose.msra.mxu0 0.0
    %366 = vmatprep.subr.mxu0 0.0
    %367 = vmatpush1.xpose.msra.mxu0 0.0
    %368 = vmatprep.subr.mxu0 0.0
    %369 = vmatpush1.xpose.msra.mxu0 0.0
    %370 = vmatprep.subr.mxu0 0.0
    %371 = vmatpush1.xpose.msra.mxu0 0.0
    %372 = vmatprep.subr.mxu0 0.0
    %373 = vmatpush1.xpose.msra.mxu0 0.0
    %374 = vmatprep.subr.mxu0 0.0
    %375 = vmatpush1.xpose.msra.mxu0 0.0
    %376 = vmatprep.subr.mxu0 0.0
    %377 = vmatpush1.xpose.msra.mxu0 0.0
    %378 = vmatprep.subr.mxu0 0.0
    %379 = vmatpush1.xpose.msra.mxu0 0.0
    %380 = vmatprep.subr.mxu0 0.0
    %381 = vmatpush1.xpose.msra.mxu0 0.0
    %382 = vmatprep.subr.mxu0 0.0
    %383 = vmatpush1.xpose.msra.mxu0 0.0
    %384 = vmatprep.subr.mxu0 0.0
    %385 = vmatpush1.xpose.msra.mxu0 0.0
    %386 = vmatprep.subr.mxu0 0.0
    %387 = vmatpush1.xpose.msra.mxu0 0.0
    %388 = vmatprep.subr.mxu0 0.0
    %389 = vmatpush1.xpose.msra.mxu0 0.0
    %390 = vmatprep.subr.mxu0 0.0
    %391 = vmatpush1.xpose.msra.mxu0 0.0
    %392 = vmatprep.subr.mxu0 0.0
    %393 = vmatpush1.xpose.msra.mxu0 0.0
    %394 = vmatprep.subr.mxu0 0.0
    %395 = vmatpush1.xpose.msra.mxu0 0.0
    %396 = vmatprep.subr.mxu0 0.0
    %397 = vmatpush1.xpose.msra.mxu0 0.0
    %398 = vmatprep.subr.mxu0 0.0
    %399 = vmatpush1.xpose.msra.mxu0 0.0
    %400 = vmatprep.subr.mxu0 0.0
    %401 = vmatpush1.xpose.msra.mxu0 0.0
    %402 = vmatprep.subr.mxu0 0.0
    %403 = vmatpush1.xpose.msra.mxu0 0.0
    %404 = vmatprep.subr.mxu0 0.0
    %405 = vmatpush1.xpose.msra.mxu0 0.0
    %406 = vmatprep.subr.mxu0 0.0
    %407 = vmatpush1.xpose.msra.mxu0 0.0
    %408 = vmatprep.subr.mxu0 0.0
    %409 = vmatpush1.xpose.msra.mxu0 0.0
    %410 = vmatprep.subr.mxu0 0.0
    %411 = vmatpush1.xpose.msra.mxu0 0.0
    %412 = vmatprep.subr.mxu0 0.0
    %413 = vmatpush1.xpose.msra.mxu0 0.0
    %414 = vmatprep.subr.mxu0 0.0
    %415 = vmatpush1.xpose.msra.mxu0 0.0
    %416 = vmatprep.mubr.f32.mxu0 0.0
    %417 = vmatmul.mubr.f32.gmra.mrb[0].mxu0 %v347
    %v418 = vpop.f32.mrb[0].mxu0
    %v419 = vadd.f32 0.0, %v418
    %v420 = vpop.f32.mrb[0].mxu0
    %421 = vdwg.mxu0
    %vm422 = vcmask 64512
    %v423 = vsel %vm422, %v343, -inf
    %424 = vmax.xlane.f32.xlu0 %v423
    %v425 = vpop.xlane.xlu0 %424
    %v426 = vsel %vm422, %v419, -inf
    %427 = vmax.xlane.f32.xlu0 %v426
    %v428 = vpop.xlane.xlu0 %427
    %v429 = vsub.f32 %v343, %v425
    %v430 = vsub.f32 %v419, %v428
    %v431 = vmul.f32 %v429, 1.442695
    %v432 = vpow.pop %v431
    %v433 = vmul.f32 %v430, 1.442695
    %v434 = vpow.pop %v433
    %v435 = vsel %vm422, %v432, 0.0
    %436 = vadd.xlane.f32.xlu0 %v435
    %v437 = vpop.xlane.xlu0 %436
    %v438 = vsel %vm422, %v434, 0.0
    %439 = vadd.xlane.f32.xlu0 %v438
    %v440 = vpop.xlane.xlu0 %439
    %v441 = vrcp.pop %v437
    %v442 = vmul.f32 %v432, %v441
    %v443 = vrcp.pop %v440
    %v444 = vmul.f32 %v434, %v443
    %v446 = vsel %vm422, %v442, 0
    %448 = vmatprep.subr.mxu0 0.0
    %449 = vmatpush1.msra.mxu0 %v81
    %450 = vmatprep.subr.mxu0 0.0
    %451 = vmatpush1.msra.mxu0 0.0
    %452 = vmatprep.subr.mxu0 0.0
    %453 = vmatpush1.msra.mxu0 0.0
    %454 = vmatprep.subr.mxu0 0.0
    %455 = vmatpush1.msra.mxu0 0.0
    %456 = vmatprep.subr.mxu0 0.0
    %457 = vmatpush1.msra.mxu0 0.0
    %458 = vmatprep.subr.mxu0 0.0
    %459 = vmatpush1.msra.mxu0 0.0
    %460 = vmatprep.subr.mxu0 0.0
    %461 = vmatpush1.msra.mxu0 0.0
    %462 = vmatprep.subr.mxu0 0.0
    %463 = vmatpush1.msra.mxu0 0.0
    %464 = vmatprep.subr.mxu0 0.0
    %465 = vmatpush1.msra.mxu0 0.0
    %466 = vmatprep.subr.mxu0 0.0
    %467 = vmatpush1.msra.mxu0 0.0
    %468 = vmatprep.subr.mxu0 0.0
    %469 = vmatpush1.msra.mxu0 0.0
    %470 = vmatprep.subr.mxu0 0.0
    %471 = vmatpush1.msra.mxu0 0.0
    %472 = vmatprep.subr.mxu0 0.0
    %473 = vmatpush1.msra.mxu0 0.0
    %474 = vmatprep.subr.mxu0 0.0
    %475 = vmatpush1.msra.mxu0 0.0
    %476 = vmatprep.subr.mxu0 0.0
    %477 = vmatpush1.msra.mxu0 0.0
    %478 = vmatprep.subr.mxu0 0.0
    %479 = vmatpush1.msra.mxu0 0.0
    %480 = vmatprep.subr.mxu0 0.0
    %481 = vmatpush1.msra.mxu0 0.0
    %482 = vmatprep.subr.mxu0 0.0
    %483 = vmatpush1.msra.mxu0 0.0
    %484 = vmatprep.subr.mxu0 0.0
    %485 = vmatpush1.msra.mxu0 0.0
    %486 = vmatprep.subr.mxu0 0.0
    %487 = vmatpush1.msra.mxu0 0.0
    %488 = vmatprep.subr.mxu0 0.0
    %489 = vmatpush1.msra.mxu0 0.0
    %490 = vmatprep.subr.mxu0 0.0
    %491 = vmatpush1.msra.mxu0 0.0
    %492 = vmatprep.subr.mxu0 0.0
    %493 = vmatpush1.msra.mxu0 0.0
    %494 = vmatprep.subr.mxu0 0.0
    %495 = vmatpush1.msra.mxu0 0.0
    %496 = vmatprep.subr.mxu0 0.0
    %497 = vmatpush1.msra.mxu0 0.0
    %498 = vmatprep.subr.mxu0 0.0
    %499 = vmatpush1.msra.mxu0 0.0
    %500 = vmatprep.subr.mxu0 0.0
    %501 = vmatpush1.msra.mxu0 0.0
    %502 = vmatprep.subr.mxu0 0.0
    %503 = vmatpush1.msra.mxu0 0.0
    %504 = vmatprep.subr.mxu0 0.0
    %505 = vmatpush1.msra.mxu0 0.0
    %506 = vmatprep.subr.mxu0 0.0
    %507 = vmatpush1.msra.mxu0 0.0
    %508 = vmatprep.subr.mxu0 0.0
    %509 = vmatpush1.msra.mxu0 0.0
    %510 = vmatprep.subr.mxu0 0.0
    %511 = vmatpush1.msra.mxu0 0.0
    %512 = vmatprep.mubr.f32.mxu0 0.0
    %513 = vmatmul.mubr.f32.gmra.mrb[0].mxu0 %v446
    %v514 = vpop.f32.mrb[0].mxu0
    %v515 = vadd.f32 0.0, %v514
    %v516 = vpop.f32.mrb[0].mxu0
    %517 = vdwg.mxu0
    %v519 = vsel %vm422, %v444, 0
    %521 = vmatprep.subr.mxu0 0.0
    %522 = vmatpush1.msra.mxu0 %v82
    %523 = vmatprep.subr.mxu0 0.0
    %524 = vmatpush1.msra.mxu0 0.0
    %525 = vmatprep.subr.mxu0 0.0
    %526 = vmatpush1.msra.mxu0 0.0
    %527 = vmatprep.subr.mxu0 0.0
    %528 = vmatpush1.msra.mxu0 0.0
    %529 = vmatprep.subr.mxu0 0.0
    %530 = vmatpush1.msra.mxu0 0.0
    %531 = vmatprep.subr.mxu0 0.0
    %532 = vmatpush1.msra.mxu0 0.0
    %533 = vmatprep.subr.mxu0 0.0
    %534 = vmatpush1.msra.mxu0 0.0
    %535 = vmatprep.subr.mxu0 0.0
    %536 = vmatpush1.msra.mxu0 0.0
    %537 = vmatprep.subr.mxu0 0.0
    %538 = vmatpush1.msra.mxu0 0.0
    %539 = vmatprep.subr.mxu0 0.0
    %540 = vmatpush1.msra.mxu0 0.0
    %541 = vmatprep.subr.mxu0 0.0
    %542 = vmatpush1.msra.mxu0 0.0
    %543 = vmatprep.subr.mxu0 0.0
    %544 = vmatpush1.msra.mxu0 0.0
    %545 = vmatprep.subr.mxu0 0.0
    %546 = vmatpush1.msra.mxu0 0.0
    %547 = vmatprep.subr.mxu0 0.0
    %548 = vmatpush1.msra.mxu0 0.0
    %549 = vmatprep.subr.mxu0 0.0
    %550 = vmatpush1.msra.mxu0 0.0
    %551 = vmatprep.subr.mxu0 0.0
    %552 = vmatpush1.msra.mxu0 0.0
    %553 = vmatprep.subr.mxu0 0.0
    %554 = vmatpush1.msra.mxu0 0.0
    %555 = vmatprep.subr.mxu0 0.0
    %556 = vmatpush1.msra.mxu0 0.0
    %557 = vmatprep.subr.mxu0 0.0
    %558 = vmatpush1.msra.mxu0 0.0
    %559 = vmatprep.subr.mxu0 0.0
    %560 = vmatpush1.msra.mxu0 0.0
    %561 = vmatprep.subr.mxu0 0.0
    %562 = vmatpush1.msra.mxu0 0.0
    %563 = vmatprep.subr.mxu0 0.0
    %564 = vmatpush1.msra.mxu0 0.0
    %565 = vmatprep.subr.mxu0 0.0
    %566 = vmatpush1.msra.mxu0 0.0
    %567 = vmatprep.subr.mxu0 0.0
    %568 = vmatpush1.msra.mxu0 0.0
    %569 = vmatprep.subr.mxu0 0.0
    %570 = vmatpush1.msra.mxu0 0.0
    %571 = vmatprep.subr.mxu0 0.0
    %572 = vmatpush1.msra.mxu0 0.0
    %573 = vmatprep.subr.mxu0 0.0
    %574 = vmatpush1.msra.mxu0 0.0
    %575 = vmatprep.subr.mxu0 0.0
    %576 = vmatpush1.msra.mxu0 0.0
    %577 = vmatprep.subr.mxu0 0.0
    %578 = vmatpush1.msra.mxu0 0.0
    %579 = vmatprep.subr.mxu0 0.0
    %580 = vmatpush1.msra.mxu0 0.0
    %581 = vmatprep.subr.mxu0 0.0
    %582 = vmatpush1.msra.mxu0 0.0
    %583 = vmatprep.subr.mxu0 0.0
    %584 = vmatpush1.msra.mxu0 0.0
    %585 = vmatprep.mubr.f32.mxu0 0.0
    %586 = vmatmul.mubr.f32.gmra.mrb[0].mxu0 %v519
    %v587 = vpop.f32.mrb[0].mxu0
    %v588 = vadd.f32 0.0, %v587
    %v589 = vpop.f32.mrb[0].mxu0
    %590 = vdwg.mxu0
    %v591 = vcombine.high %v515, 0.0
    %v593 = vunpack.c.l.s4 1983009808
    %v594 = vunpack.c.0.s8 %v593
    %v595 = vlaneseq
    %v596 = vshrl.u32 %v595, 7
    %v597 = vsub.s32 %v594, %v596
    %v598 = vrot.slane %v515, %v597
    %v600 = vunpack.c.l.s4 1983009808
    %v601 = vunpack.c.0.s8 %v600
    %v602 = vlaneseq
    %v603 = vshrl.u32 %v602, 7
    %v604 = vsub.s32 %v601, %v603
    %v605 = vrot.slane %v591, %v604
    %v606 = vcombine.high %v598, 0.0
    %v608 = vunpack.c.l.s4 1934713408
    %v609 = vunpack.c.0.s8 %v608
    %v610 = vlaneseq
    %v611 = vshrl.u32 %v610, 7
    %v612 = vsub.s32 %v609, %v611
    %v613 = vrot.slane %v598, %v612
    %v615 = vunpack.c.l.s4 1934713408
    %v616 = vunpack.c.0.s8 %v615
    %v617 = vlaneseq
    %v618 = vshrl.u32 %v617, 7
    %v619 = vsub.s32 %v616, %v618
    %v620 = vrot.slane %v606, %v619
    %v621 = vcombine.high %v605, 0.0
    %v623 = vunpack.c.l.s4 1934713408
    %v624 = vunpack.c.0.s8 %v623
    %v625 = vlaneseq
    %v626 = vshrl.u32 %v625, 7
    %v627 = vsub.s32 %v624, %v626
    %v628 = vrot.slane %v605, %v627
    %v630 = vunpack.c.l.s4 1934713408
    %v631 = vunpack.c.0.s8 %v630
    %v632 = vlaneseq
    %v633 = vshrl.u32 %v632, 7
    %v634 = vsub.s32 %v631, %v633
    %v635 = vrot.slane %v621, %v634
    %v636 = vcombine.high %v613, 0.0
    %v637 = vcombine.high %v620, 0.0
    %v638 = vcombine.high %v628, 0.0
    %v639 = vcombine.high %v635, 0.0
    %v640 = vcombine.high %v588, 0.0
    %v642 = vunpack.c.l.s4 1983009808
    %v643 = vunpack.c.0.s8 %v642
    %v644 = vlaneseq
    %v645 = vshrl.u32 %v644, 7
    %v646 = vsub.s32 %v643, %v645
    %v647 = vrot.slane %v588, %v646
    %v649 = vunpack.c.l.s4 1983009808
    %v650 = vunpack.c.0.s8 %v649
    %v651 = vlaneseq
    %v652 = vshrl.u32 %v651, 7
    %v653 = vsub.s32 %v650, %v652
    %v654 = vrot.slane %v640, %v653
    %v655 = vcombine.high %v647, 0.0
    %v657 = vunpack.c.l.s4 1934713408
    %v658 = vunpack.c.0.s8 %v657
    %v659 = vlaneseq
    %v660 = vshrl.u32 %v659, 7
    %v661 = vsub.s32 %v658, %v660
    %v662 = vrot.slane %v647, %v661
    %v664 = vunpack.c.l.s4 1934713408
    %v665 = vunpack.c.0.s8 %v664
    %v666 = vlaneseq
    %v667 = vshrl.u32 %v666, 7
    %v668 = vsub.s32 %v665, %v667
    %v669 = vrot.slane %v655, %v668
    %v670 = vcombine.high %v654, 0.0
    %v672 = vunpack.c.l.s4 1934713408
    %v673 = vunpack.c.0.s8 %v672
    %v674 = vlaneseq
    %v675 = vshrl.u32 %v674, 7
    %v676 = vsub.s32 %v673, %v675
    %v677 = vrot.slane %v654, %v676
    %v679 = vunpack.c.l.s4 1934713408
    %v680 = vunpack.c.0.s8 %v679
    %v681 = vlaneseq
    %v682 = vshrl.u32 %v681, 7
    %v683 = vsub.s32 %v680, %v682
    %v684 = vrot.slane %v670, %v683
    %v685 = vcombine.high %v662, 0.0
    %v686 = vcombine.high %v669, 0.0
    %v687 = vcombine.high %v677, 0.0
    %v688 = vcombine.high %v684, 0.0
    %691 = vrot.lane.b32.xlu0 %v636, 32
    %v692 = vpop.permute.xlu0 %691
    %693 = vrot.lane.b32.xlu0 %v685, 32
    %v694 = vpop.permute.xlu0 %693
    %699 = vrot.lane.b32.xlu0 %v620, 64
    %v700 = vpop.permute.xlu0 %699
    %701 = vrot.lane.b32.xlu0 %v669, 64
    %v702 = vpop.permute.xlu0 %701
    %707 = vrot.lane.b32.xlu0 %v637, 96
    %v708 = vpop.permute.xlu0 %707
    %709 = vrot.lane.b32.xlu0 %v686, 96
    %v710 = vpop.permute.xlu0 %709
    %715 = vrot.lane.b32.xlu0 %v638, 32
    %v716 = vpop.permute.xlu0 %715
    %717 = vrot.lane.b32.xlu0 %v687, 32
    %v718 = vpop.permute.xlu0 %717
    %723 = vrot.lane.b32.xlu0 %v635, 64
    %v724 = vpop.permute.xlu0 %723
    %725 = vrot.lane.b32.xlu0 %v684, 64
    %v726 = vpop.permute.xlu0 %725
    %731 = vrot.lane.b32.xlu0 %v639, 96
    %v732 = vpop.permute.xlu0 %731
    %733 = vrot.lane.b32.xlu0 %v688, 96
    %v734 = vpop.permute.xlu0 %733
    %v737 = vsel %vm95, %v613, %v692
    %v738 = vsel %vm95, %v662, %v694
    %vm739 = vcmask 523264
    %v740 = vsel %vm739, %v737, %v700
    %v741 = vsel %vm739, %v738, %v702
    %vm742 = vcmask 785408
    %v743 = vsel %vm742, %v740, %v708
    %v744 = vsel %vm742, %v741, %v710
    %v745 = vsel %vm95, %v628, %v716
    %v746 = vsel %vm95, %v677, %v718
    %v747 = vsel %vm739, %v745, %v724
    %v748 = vsel %vm739, %v746, %v726
    %v749 = vsel %vm742, %v747, %v732
    %v750 = vsel %vm742, %v748, %v734
    %v755 = vcombine.low %v743, %v749
    %v757 = vunpack.c.l.s4 1966171168
    %v758 = vunpack.c.0.s8 %v757
    %v759 = vlaneseq
    %v760 = vshrl.u32 %v759, 7
    %v761 = vsub.s32 %v758, %v760
    %v762 = vrot.slane %v755, %v761
    %v764 = vunpack.c.l.s4 1966171168
    %v765 = vunpack.c.0.s8 %v764
    %v766 = vlaneseq
    %v767 = vshrl.u32 %v766, 7
    %v768 = vsub.s32 %v765, %v767
    %v769 = vrot.slane %v762, %v768
    %v770 = vcombine.low %v744, %v750
    %v772 = vunpack.c.l.s4 1966171168
    %v773 = vunpack.c.0.s8 %v772
    %v774 = vlaneseq
    %v775 = vshrl.u32 %v774, 7
    %v776 = vsub.s32 %v773, %v775
    %v777 = vrot.slane %v770, %v776
    %v779 = vunpack.c.l.s4 1966171168
    %v780 = vunpack.c.0.s8 %v779
    %v781 = vlaneseq
    %v782 = vshrl.u32 %v781, 7
    %v783 = vsub.s32 %v780, %v782
    %v784 = vrot.slane %v777, %v783
    %v787 = vlaneseq
    %vm788 = vcmp.ge.s32.totalorder %v787, 0
    %vm789 = vcmp.lt.s32.totalorder %v787, 256
    %vm790 = vmand %vm788, %vm789
    %791 = vst.msk [vmem:[#allocation10] sm:$0x3] %vm790, %v769
    %792 = vst.msk [vmem:[#allocation10 + $0x2] sm:$0x3] %vm790, %v784
    // Predicated region
    $region42: #{tpu_custom_call.1} parent=1 // pred_check
      _
    $region43: #{tpu_custom_call.1} parent=1 // pred_check_branch
      %794 = sbr.rel (0) target = $region45
    $region44: #{tpu_custom_call.1} parent=1 // pred_region
      %s796 = ssub.s32 64, 64
      %797 = vsyncadd [#allocation4], %s796
      %s798 = sshll.u32 [#allocation10], 4
      %s799 = int_to_ptr.vmem [resolvable:$true] %s798
      %804 = dma.vmem_to_hbm [thread:$0]  %s799, 64, %s6, [#allocation4], 32, 32, 2
    $region45: #{tpu_custom_call.1} parent=1 // pred_fallthru
      _
    // Predicated region
    $region46: #{tpu_custom_call.1} parent=1 // pred_check
      _
    $region47: #{tpu_custom_call.1} parent=1 // pred_check_branch
      %806 = sbr.rel (0) target = $region49
    $region48: #{tpu_custom_call.1} parent=1 // pred_region
      %807 = dma.done [#allocation4], 64
    $region49: #{tpu_custom_call.1} parent=1 // pred_fallthru
      _
    %808 = vsyncpa [#allocation3], 1
    %809 = vsyncpa [#allocation6], 1
    %810 = vsyncpa [#allocation9], 1
    %811 = vsyncpa [#allocation4], 1

</llo_original>
